<compile_context>
chip_gen: v7x
topology: tpu7x:2x2x1
jax: 0.10.0
libtpu: 0.0.40
codegen_flags: <defaults>
</compile_context>

<pallas_src>
import functools

import jax
import jax.numpy as jnp
from jax.experimental import pallas as pl
from jax.experimental.pallas import tpu as pltpu


def textrnn2_kernel(x_ref, len_ref, wih_ref, whh_ref, b_ref, wc_ref, bc_ref,
                    o_ref, pre_scr, rout_scr, score_scr, hf_scr, ctx_scr,
                    *, valid_time, valid_classes, t_chunk):
    Tp, Bt, Ep = x_ref.shape
    Hp = whh_ref.shape[0]
    Tc = t_chunk
    n_chunks = Tp // Tc
    chunk_unroll = n_chunks <= 4
    store_dtype = rout_scr.dtype
    mxu_dtype = whh_ref.dtype

    lens = len_ref[...]                      # (Bt, 1) int32
    wih = wih_ref[...]                       # (Ep, Hp)  hoisted weight loads
    whh = whh_ref[...]                       # (Hp, Hp)
    bias = b_ref[...]                        # (1, Hp) f32  (= b_ih + b_hh)

    # ---- 1) recurrence, chunked over T --------------------------------------
    def chunk_step(c, h):
        t0 = pl.multiple_of(c * Tc, Tc)
        # Per-chunk input projection: one big MXU GEMM off the per-step chain.
        x_chunk = x_ref[pl.ds(t0, Tc)]                        # (Tc, Bt, Ep)
        pre = jnp.dot(x_chunk.reshape(Tc * Bt, Ep), wih,
                      preferred_element_type=jnp.float32) + bias
        pre_scr[...] = pre.reshape(Tc, Bt, Hp)                # f32 pre-activations

        def step(tc, h):
            t = t0 + tc
            valid = t < lens                                  # (Bt, 1) bool
            h_new = jnp.tanh(pre_scr[tc] +
                             jnp.dot(h.astype(mxu_dtype), whh,
                                     preferred_element_type=jnp.float32))
            # r_output: padded steps are zero (pad_packed_sequence behaviour).
            rout_scr[t] = jnp.where(valid, h_new, 0.0).astype(store_dtype)
            # Freeze h on padded rows -> final carry == h_{len-1}.
            return jnp.where(valid, h_new, h)

        return jax.lax.fori_loop(0, Tc, step, h, unroll=True)

    hf = jax.lax.fori_loop(0, n_chunks, chunk_step,
                           jnp.zeros((Bt, Hp), jnp.float32),
                           unroll=chunk_unroll)
    hf_scr[...] = hf                                          # (Bt, Hp) f32

    # ---- 2) attention scores, chunked: scores[t,b] = <r_out[t,b,:], hf[b,:]> -
    def score_step(c, carry):
        t0 = pl.multiple_of(c * Tc, Tc)
        r = rout_scr[pl.ds(t0, Tc)].astype(jnp.float32)       # (Tc, Bt, Hp)
        score_scr[pl.ds(t0, Tc)] = jnp.sum(
            r * hf_scr[...][None, :, :], axis=-1)             # (Tc, Bt)
        return carry
    jax.lax.fori_loop(0, n_chunks, score_step, 0, unroll=chunk_unroll)

    # ---- 3) softmax over time. Padded-batch steps keep their exact score of 0
    #         (included, matching PyTorch); kernel-added steps t >= valid_time
    #         are excluded.  Exact divide (no approx reciprocal).
    scores = score_scr[...]                                   # (Tp, Bt) f32
    m = jnp.max(scores, axis=0, keepdims=True)
    e = jnp.exp(scores - m)
    if valid_time < Tp:
        t_iota = jax.lax.broadcasted_iota(jnp.int32, (Tp, Bt), 0)
        e = jnp.where(t_iota < valid_time, e, 0.0)
    score_scr[...] = e / jnp.sum(e, axis=0, keepdims=True)    # attn weights p

    # ---- 4) context, chunked: ctx[b,:] = sum_t p[t,b] * r_out[t,b,:] ---------
    ctx_scr[...] = jnp.zeros_like(ctx_scr)

    def ctx_step(c, carry):
        t0 = pl.multiple_of(c * Tc, Tc)
        r = rout_scr[pl.ds(t0, Tc)].astype(jnp.float32)       # (Tc, Bt, Hp)
        p = score_scr[pl.ds(t0, Tc)]                          # (Tc, Bt)
        ctx_scr[...] += jnp.sum(r * p[:, :, None], axis=0)    # small p relayout only
        return carry
    jax.lax.fori_loop(0, n_chunks, ctx_step, 0, unroll=chunk_unroll)

    # ---- 5) classifier + log_softmax over the real classes -------------------
    logits = jnp.dot(ctx_scr[...].astype(mxu_dtype), wc_ref[...],
                     preferred_element_type=jnp.float32) + bc_ref[...]  # (Bt, Cp)
    if valid_classes < logits.shape[-1]:
        c_iota = jax.lax.broadcasted_iota(jnp.int32, logits.shape, 1)
        logits = jnp.where(c_iota < valid_classes, logits, -1e30)
    lmax = jnp.max(logits, axis=-1, keepdims=True)
    sh = logits - lmax
    o_ref[...] = sh - jnp.log(jnp.sum(jnp.exp(sh), axis=-1, keepdims=True))


def _round_up(n, m):
    return ((n + m - 1) // m) * m


def _vmem_budget_bytes():
    """~80% of physical VMEM (headroom for compiler-internal scratch)."""
    try:
        cap = int(pltpu.get_tpu_info().vmem_capacity_bytes)
    except Exception:
        cap = 64 * 1024 * 1024            # v7x-sized fallback: safe on all parts
    return min(int(0.8 * cap), 104 * 1024 * 1024)


def textrnn2_forward(x_btE, lengths, wih, whh, b_ih, b_hh, wc, bc,
                     mxu_dtype=jnp.bfloat16, batch_tile=None, t_chunk=8):
    """TextRNN2 forward.

    x_btE:   (B, T, E) float32, pre-embedded, zero-padded along T.
    lengths: (B,) int32 with 1 <= lengths <= T and max(lengths) == T
             (the pad_packed_sequence invariant of the PyTorch module).
    mxu_dtype: dtype of the MXU *operands* (x / weights / h); accumulation and
             all elementwise math stay f32.  bf16 (default) avoids the
             multi-pass f32 MXU emulation on v5e/v6e/v7x.
    """
    B, T, E = x_btE.shape
    H = wih.shape[0]
    C = wc.shape[0]

    Ep = _round_up(E, 128)
    Hp = _round_up(H, 128)
    Cp = _round_up(C, 128)
    Tc = max(1, min(int(t_chunk), T))
    Tp = _round_up(T, Tc)

    mxu_dtype = jnp.dtype(mxu_dtype)
    store_dtype = (jnp.dtype(jnp.bfloat16) if mxu_dtype == jnp.dtype(jnp.bfloat16)
                   else jnp.dtype(jnp.float32))
    msz = mxu_dtype.itemsize
    ssz = store_dtype.itemsize

    def block_bytes(bt):
        io = (Tp * bt * Ep * msz                                  # x block
              + bt * 4                                            # lengths block
              + (Ep * Hp + Hp * Hp + Hp * Cp) * msz + (Hp + Cp) * 4
              + bt * Cp * 4)                                      # output block
        scratch = (Tc * bt * Hp * 4                               # pre-activations
                   + Tp * bt * Hp * ssz                           # r_output
                   + Tp * bt * 4                                  # scores / p
                   + 2 * bt * Hp * 4)                             # hf + ctx
        return 2 * io + scratch                                   # x2: double buffers

    budget = _vmem_budget_bytes()
    if batch_tile is None:
        Bt = min(_round_up(B, 8), 256)
        while Bt > 8 and block_bytes(Bt) > budget:
            Bt = max(8, _round_up(Bt // 2, 8))
    else:
        Bt = _round_up(int(batch_tile), 8)
    Bp = _round_up(B, Bt)

    vmem_limit = int(max(32 * 1024 * 1024,
                         min(budget, int(1.25 * block_bytes(Bt)) + (2 << 20))))

    # Fused pad + cast + transpose: (B,T,E) f32 -> (Tp,Bp,Ep) mxu_dtype.
    x_p = jnp.pad(x_btE.astype(mxu_dtype),
                  ((0, Bp - B), (0, Tp - T), (0, Ep - E))).transpose(1, 0, 2)
    lens_p = jnp.ones((Bp,), jnp.int32).at[:B].set(
        lengths.astype(jnp.int32)).reshape(Bp, 1)

    wih_p = jnp.zeros((Ep, Hp), mxu_dtype).at[:E, :H].set(wih.T.astype(mxu_dtype))
    whh_p = jnp.zeros((Hp, Hp), mxu_dtype).at[:H, :H].set(whh.T.astype(mxu_dtype))
    b_p = jnp.zeros((1, Hp), jnp.float32).at[0, :H].set(
        (b_ih + b_hh).astype(jnp.float32))
    wc_p = jnp.zeros((Hp, Cp), mxu_dtype).at[:H, :C].set(wc.T.astype(mxu_dtype))
    bc_p = jnp.zeros((1, Cp), jnp.float32).at[0, :C].set(bc.astype(jnp.float32))

    kernel = functools.partial(textrnn2_kernel, valid_time=T,
                               valid_classes=C, t_chunk=Tc)

    out = pl.pallas_call(
        kernel,
        out_shape=jax.ShapeDtypeStruct((Bp, Cp), jnp.float32),
        grid_spec=pltpu.PrefetchScalarGridSpec(
            num_scalar_prefetch=0,
            grid=(Bp // Bt,),
            in_specs=[
                pl.BlockSpec((Tp, Bt, Ep), lambda i: (0, i, 0)),   # x (time-major)
                pl.BlockSpec((Bt, 1), lambda i: (i, 0)),           # lengths
                pl.BlockSpec((Ep, Hp), lambda i: (0, 0)),          # W_ih^T
                pl.BlockSpec((Hp, Hp), lambda i: (0, 0)),          # W_hh^T
                pl.BlockSpec((1, Hp), lambda i: (0, 0)),           # b_ih + b_hh
                pl.BlockSpec((Hp, Cp), lambda i: (0, 0)),          # W_c^T
                pl.BlockSpec((1, Cp), lambda i: (0, 0)),           # b_c
            ],
            out_specs=pl.BlockSpec((Bt, Cp), lambda i: (i, 0)),
            scratch_shapes=[
                pltpu.VMEM((Tc, Bt, Hp), jnp.float32),     # pre-activation chunk
                pltpu.VMEM((Tp, Bt, Hp), store_dtype),     # r_output (post-tanh)
                pltpu.VMEM((Tp, Bt), jnp.float32),         # scores / attn weights
                pltpu.VMEM((Bt, Hp), jnp.float32),         # final hidden state
                pltpu.VMEM((Bt, Hp), jnp.float32),         # context accumulator
            ]),
        compiler_params=pltpu.CompilerParams(
            dimension_semantics=("parallel",),
            vmem_limit_bytes=vmem_limit),
    )(x_p, lens_p, wih_p, whh_p, b_p, wc_p, bc_p)
    return out[:B, :C]


def textrnn2_reference(x_btE, lengths, wih, whh, b_ih, b_hh, wc, bc):
    """Pure-JAX f32 reference mirroring the PyTorch forward."""
    B, T, E = x_btE.shape
    H = wih.shape[0]
    with jax.default_matmul_precision("highest"):
        h = jnp.zeros((B, H), jnp.float32)
        hf = jnp.zeros((B, H), jnp.float32)
        outs = []
        for t in range(T):
            h = jnp.tanh(x_btE[:, t, :] @ wih.T + b_ih + h @ whh.T + b_hh)
            valid = (t < lengths)[:, None].astype(jnp.float32)
            is_last = (t == lengths - 1)[:, None].astype(jnp.float32)
            outs.append(h * valid)
            hf = hf + h * is_last
        r_out = jnp.stack(outs, axis=1)                        # (B, T, H)
        scores = jnp.einsum('bth,bh->bt', r_out, hf)
        p = jax.nn.softmax(scores, axis=1)
        ctx = jnp.einsum('bth,bt->bh', r_out, p)
        logits = ctx @ wc.T + bc
        return jax.nn.log_softmax(logits, axis=-1)


if __name__ == "__main__":
    # Small shapes consistent with the module's forward.
    B, T, E, H, C = 2, 8, 16, 32, 4

    key = jax.random.PRNGKey(0)
    k_x, k_wih, k_whh, k_bih, k_bhh, k_wc, k_bc = jax.random.split(key, 7)

    # PyTorch-style uniform(-1/sqrt(H), 1/sqrt(H)) init.
    s = 1.0 / jnp.sqrt(H)
    wih = jax.random.uniform(k_wih, (H, E), jnp.float32, -s, s)
    whh = jax.random.uniform(k_whh, (H, H), jnp.float32, -s, s)
    b_ih = jax.random.uniform(k_bih, (H,), jnp.float32, -s, s)
    b_hh = jax.random.uniform(k_bhh, (H,), jnp.float32, -s, s)
    wc = jax.random.uniform(k_wc, (C, H), jnp.float32, -s, s)
    bc = jax.random.uniform(k_bc, (C,), jnp.float32, -s, s)

    # Pre-embedded padded batch + lengths (sorted descending, max == T).
    x = jax.random.normal(k_x, (B, T, E), jnp.float32)
    lengths = jnp.array([T, 5], dtype=jnp.int32)

    ref = textrnn2_reference(x, lengths, wih, whh, b_ih, b_hh, wc, bc)

    # Exact-operand (f32 MXU) path: matches the f32 reference tightly.
    out_f32 = textrnn2_forward(x, lengths, wih, whh, b_ih, b_hh, wc, bc,
                               mxu_dtype=jnp.float32)
    jax.block_until_ready(out_f32)
    assert out_f32.shape == (B, C)
    assert jnp.allclose(out_f32, ref, rtol=1e-3, atol=1e-3), (out_f32, ref)

    # Default bf16-operand path (f32 accumulation).  Looser tolerance covers
    # bf16 operand rounding compounding over the T recurrence steps.
    out_bf16 = textrnn2_forward(x, lengths, wih, whh, b_ih, b_hh, wc, bc)
    jax.block_until_ready(out_bf16)
    assert out_bf16.shape == (B, C)
    assert jnp.allclose(out_bf16, ref, rtol=1e-1, atol=1e-1), (out_bf16, ref)

    print("KERNEL_OK")
</pallas_src>

<mosaic_0001>
module attributes {stable_mosaic.version = 11 : i64} {
  func.func @textrnn2_kernel(%arg0: i32, %arg1: memref<8x8x128xf32, #tpu.memory_space<vmem>>, %arg2: memref<8x1xi32, #tpu.memory_space<vmem>>, %arg3: memref<128x128xf32, #tpu.memory_space<vmem>>, %arg4: memref<128x128xf32, #tpu.memory_space<vmem>>, %arg5: memref<1x128xf32, #tpu.memory_space<vmem>>, %arg6: memref<128x128xf32, #tpu.memory_space<vmem>>, %arg7: memref<1x128xf32, #tpu.memory_space<vmem>>, %arg8: memref<8x128xf32, #tpu.memory_space<vmem>>, %arg9: memref<8x8x128xf32, #tpu.memory_space<vmem>>, %arg10: memref<8x8x128xf32, #tpu.memory_space<vmem>>, %arg11: memref<8x8xf32, #tpu.memory_space<vmem>>, %arg12: memref<8x128xf32, #tpu.memory_space<vmem>>, %arg13: memref<8x128xf32, #tpu.memory_space<vmem>>) attributes {dimension_semantics = [#tpu.dimension_semantics<parallel>], iteration_bounds = array<i64: 1>, scalar_prefetch = 0 : i64, scratch_operands = 5 : i64, tpu.core_type = #tpu.core_type<tc>, window_params = [{transform_indices = @transform_0, window_bounds = array<i64: 8, 8, 128>}, {transform_indices = @transform_1, window_bounds = array<i64: 8, 1>}, {pipeline_mode = #tpu.pipeline_mode<synchronous>, transform_indices = @transform_2, window_bounds = array<i64: 128, 128>}, {pipeline_mode = #tpu.pipeline_mode<synchronous>, transform_indices = @transform_3, window_bounds = array<i64: 128, 128>}, {pipeline_mode = #tpu.pipeline_mode<synchronous>, transform_indices = @transform_4, window_bounds = array<i64: 1, 128>}, {pipeline_mode = #tpu.pipeline_mode<synchronous>, transform_indices = @transform_5, window_bounds = array<i64: 128, 128>}, {pipeline_mode = #tpu.pipeline_mode<synchronous>, transform_indices = @transform_6, window_bounds = array<i64: 1, 128>}, {transform_indices = @transform_7, window_bounds = array<i64: 8, 128>}]} {
    %c0 = arith.constant 0 : index
    %c0_0 = arith.constant 0 : index
    %0 = vector.load %arg2[%c0, %c0_0] : memref<8x1xi32, #tpu.memory_space<vmem>>, vector<8x1xi32>
    %c0_1 = arith.constant 0 : index
    %c0_2 = arith.constant 0 : index
    %1 = vector.load %arg3[%c0_1, %c0_2] : memref<128x128xf32, #tpu.memory_space<vmem>>, vector<128x128xf32>
    %c0_3 = arith.constant 0 : index
    %c0_4 = arith.constant 0 : index
    %2 = vector.load %arg4[%c0_3, %c0_4] : memref<128x128xf32, #tpu.memory_space<vmem>>, vector<128x128xf32>
    %c0_5 = arith.constant 0 : index
    %c0_6 = arith.constant 0 : index
    %3 = vector.load %arg5[%c0_5, %c0_6] : memref<1x128xf32, #tpu.memory_space<vmem>>, vector<1x128xf32>
    %cst = arith.constant 0.000000e+00 : f32
    %4 = vector.broadcast %cst : f32 to vector<8x128xf32>
    %c0_i32 = arith.constant 0 : i32
    %c8_i32 = arith.constant 8 : i32
    %5 = arith.muli %c0_i32, %c8_i32 : i32
    %6 = tpu.assume_multiple %5, 8 : i32
    %7 = arith.index_cast %6 : i32 to index
    %c0_7 = arith.constant 0 : index
    %c0_8 = arith.constant 0 : index
    %8 = vector.load %arg1[%7, %c0_7, %c0_8] : memref<8x8x128xf32, #tpu.memory_space<vmem>>, vector<8x8x128xf32>
    %9 = vector.shape_cast %8 : vector<8x8x128xf32> to vector<64x128xf32>
    %cst_9 = arith.constant dense<0.000000e+00> : vector<64x128xf32>
    %10 = tpu.matmul %9, %1, %cst_9 {dimension_numbers = #tpu.dot_dimension_numbers<[1], [0], [0], [1], [0, 0, 1, 1], [], []>} : vector<64x128xf32>, vector<128x128xf32>, vector<64x128xf32> -> vector<64x128xf32>
    %11 = vector.broadcast %3 : vector<1x128xf32> to vector<64x128xf32>
    %12 = arith.addf %10, %11 : vector<64x128xf32>
    %13 = vector.shape_cast %12 : vector<64x128xf32> to vector<8x8x128xf32>
    %c0_10 = arith.constant 0 : index
    %c0_11 = arith.constant 0 : index
    %c0_12 = arith.constant 0 : index
    %14 = vector.load %arg9[%c0_10, %c0_11, %c0_12] : memref<8x8x128xf32, #tpu.memory_space<vmem>>, vector<8x8x128xf32>
    tpu.vector_store %arg9[%c0_10, %c0_11, %c0_12], %13 {strides = array<i32>} : memref<8x8x128xf32, #tpu.memory_space<vmem>>, vector<8x8x128xf32>,
    %c0_i32_13 = arith.constant 0 : i32
    %15 = arith.addi %6, %c0_i32_13 : i32
    %16 = vector.broadcast %15 : i32 to vector<8x1xi32>
    %17 = arith.cmpi slt, %16, %0 : vector<8x1xi32>
    %18 = arith.index_cast %c0_i32_13 : i32 to index
    %c0_14 = arith.constant 0 : index
    %c0_15 = arith.constant 0 : index
    %19 = vector.load %arg9[%18, %c0_14, %c0_15] : memref<8x8x128xf32, #tpu.memory_space<vmem>>, vector<1x8x128xf32>
    %20 = vector.shape_cast %19 : vector<1x8x128xf32> to vector<8x128xf32>
    %cst_16 = arith.constant dense<0.000000e+00> : vector<8x128xf32>
    %21 = tpu.matmul %4, %2, %cst_16 {dimension_numbers = #tpu.dot_dimension_numbers<[1], [0], [0], [1], [0, 0, 1, 1], [], []>} : vector<8x128xf32>, vector<128x128xf32>, vector<8x128xf32> -> vector<8x128xf32>
    %22 = arith.addf %20, %21 : vector<8x128xf32>
    %23 = math.tanh %22 : vector<8x128xf32>
    %cst_17 = arith.constant 0.000000e+00 : f32
    %24 = vector.shape_cast %17 : vector<8x1xi1> to vector<8x1xi1>
    %25 = vector.broadcast %24 : vector<8x1xi1> to vector<8x128xi1>
    %26 = vector.broadcast %cst_17 : f32 to vector<8x128xf32>
    %27 = arith.select %25, %23, %26 : vector<8x128xi1>, vector<8x128xf32>
    %28 = arith.index_cast %15 : i32 to index
    %c0_18 = arith.constant 0 : index
    %c0_19 = arith.constant 0 : index
    %29 = vector.load %arg10[%28, %c0_18, %c0_19] : memref<8x8x128xf32, #tpu.memory_space<vmem>>, vector<1x8x128xf32>
    %30 = vector.shape_cast %29 : vector<1x8x128xf32> to vector<8x128xf32>
    %31 = vector.shape_cast %27 : vector<8x128xf32> to vector<1x8x128xf32>
    tpu.vector_store %arg10[%28, %c0_18, %c0_19], %31 {strides = array<i32>} : memref<8x8x128xf32, #tpu.memory_space<vmem>>, vector<1x8x128xf32>,
    %32 = vector.shape_cast %17 : vector<8x1xi1> to vector<8x1xi1>
    %33 = vector.broadcast %32 : vector<8x1xi1> to vector<8x128xi1>
    %34 = arith.select %33, %23, %4 : vector<8x128xi1>, vector<8x128xf32>
    %c1_i32 = arith.constant 1 : i32
    %35 = arith.addi %6, %c1_i32 : i32
    %36 = vector.broadcast %35 : i32 to vector<8x1xi32>
    %37 = arith.cmpi slt, %36, %0 : vector<8x1xi32>
    %38 = arith.index_cast %c1_i32 : i32 to index
    %c0_20 = arith.constant 0 : index
    %c0_21 = arith.constant 0 : index
    %39 = vector.load %arg9[%38, %c0_20, %c0_21] : memref<8x8x128xf32, #tpu.memory_space<vmem>>, vector<1x8x128xf32>
    %40 = vector.shape_cast %39 : vector<1x8x128xf32> to vector<8x128xf32>
    %cst_22 = arith.constant dense<0.000000e+00> : vector<8x128xf32>
    %41 = tpu.matmul %34, %2, %cst_22 {dimension_numbers = #tpu.dot_dimension_numbers<[1], [0], [0], [1], [0, 0, 1, 1], [], []>} : vector<8x128xf32>, vector<128x128xf32>, vector<8x128xf32> -> vector<8x128xf32>
    %42 = arith.addf %40, %41 : vector<8x128xf32>
    %43 = math.tanh %42 : vector<8x128xf32>
    %cst_23 = arith.constant 0.000000e+00 : f32
    %44 = vector.shape_cast %37 : vector<8x1xi1> to vector<8x1xi1>
    %45 = vector.broadcast %44 : vector<8x1xi1> to vector<8x128xi1>
    %46 = vector.broadcast %cst_23 : f32 to vector<8x128xf32>
    %47 = arith.select %45, %43, %46 : vector<8x128xi1>, vector<8x128xf32>
    %48 = arith.index_cast %35 : i32 to index
    %c0_24 = arith.constant 0 : index
    %c0_25 = arith.constant 0 : index
    %49 = vector.load %arg10[%48, %c0_24, %c0_25] : memref<8x8x128xf32, #tpu.memory_space<vmem>>, vector<1x8x128xf32>
    %50 = vector.shape_cast %49 : vector<1x8x128xf32> to vector<8x128xf32>
    %51 = vector.shape_cast %47 : vector<8x128xf32> to vector<1x8x128xf32>
    tpu.vector_store %arg10[%48, %c0_24, %c0_25], %51 {strides = array<i32>} : memref<8x8x128xf32, #tpu.memory_space<vmem>>, vector<1x8x128xf32>,
    %52 = vector.shape_cast %37 : vector<8x1xi1> to vector<8x1xi1>
    %53 = vector.broadcast %52 : vector<8x1xi1> to vector<8x128xi1>
    %54 = arith.select %53, %43, %34 : vector<8x128xi1>, vector<8x128xf32>
    %c2_i32 = arith.constant 2 : i32
    %55 = arith.addi %6, %c2_i32 : i32
    %56 = vector.broadcast %55 : i32 to vector<8x1xi32>
    %57 = arith.cmpi slt, %56, %0 : vector<8x1xi32>
    %58 = arith.index_cast %c2_i32 : i32 to index
    %c0_26 = arith.constant 0 : index
    %c0_27 = arith.constant 0 : index
    %59 = vector.load %arg9[%58, %c0_26, %c0_27] : memref<8x8x128xf32, #tpu.memory_space<vmem>>, vector<1x8x128xf32>
    %60 = vector.shape_cast %59 : vector<1x8x128xf32> to vector<8x128xf32>
    %cst_28 = arith.constant dense<0.000000e+00> : vector<8x128xf32>
    %61 = tpu.matmul %54, %2, %cst_28 {dimension_numbers = #tpu.dot_dimension_numbers<[1], [0], [0], [1], [0, 0, 1, 1], [], []>} : vector<8x128xf32>, vector<128x128xf32>, vector<8x128xf32> -> vector<8x128xf32>
    %62 = arith.addf %60, %61 : vector<8x128xf32>
    %63 = math.tanh %62 : vector<8x128xf32>
    %cst_29 = arith.constant 0.000000e+00 : f32
    %64 = vector.shape_cast %57 : vector<8x1xi1> to vector<8x1xi1>
    %65 = vector.broadcast %64 : vector<8x1xi1> to vector<8x128xi1>
    %66 = vector.broadcast %cst_29 : f32 to vector<8x128xf32>
    %67 = arith.select %65, %63, %66 : vector<8x128xi1>, vector<8x128xf32>
    %68 = arith.index_cast %55 : i32 to index
    %c0_30 = arith.constant 0 : index
    %c0_31 = arith.constant 0 : index
    %69 = vector.load %arg10[%68, %c0_30, %c0_31] : memref<8x8x128xf32, #tpu.memory_space<vmem>>, vector<1x8x128xf32>
    %70 = vector.shape_cast %69 : vector<1x8x128xf32> to vector<8x128xf32>
    %71 = vector.shape_cast %67 : vector<8x128xf32> to vector<1x8x128xf32>
    tpu.vector_store %arg10[%68, %c0_30, %c0_31], %71 {strides = array<i32>} : memref<8x8x128xf32, #tpu.memory_space<vmem>>, vector<1x8x128xf32>,
    %72 = vector.shape_cast %57 : vector<8x1xi1> to vector<8x1xi1>
    %73 = vector.broadcast %72 : vector<8x1xi1> to vector<8x128xi1>
    %74 = arith.select %73, %63, %54 : vector<8x128xi1>, vector<8x128xf32>
    %c3_i32 = arith.constant 3 : i32
    %75 = arith.addi %6, %c3_i32 : i32
    %76 = vector.broadcast %75 : i32 to vector<8x1xi32>
    %77 = arith.cmpi slt, %76, %0 : vector<8x1xi32>
    %78 = arith.index_cast %c3_i32 : i32 to index
    %c0_32 = arith.constant 0 : index
    %c0_33 = arith.constant 0 : index
    %79 = vector.load %arg9[%78, %c0_32, %c0_33] : memref<8x8x128xf32, #tpu.memory_space<vmem>>, vector<1x8x128xf32>
    %80 = vector.shape_cast %79 : vector<1x8x128xf32> to vector<8x128xf32>
    %cst_34 = arith.constant dense<0.000000e+00> : vector<8x128xf32>
    %81 = tpu.matmul %74, %2, %cst_34 {dimension_numbers = #tpu.dot_dimension_numbers<[1], [0], [0], [1], [0, 0, 1, 1], [], []>} : vector<8x128xf32>, vector<128x128xf32>, vector<8x128xf32> -> vector<8x128xf32>
    %82 = arith.addf %80, %81 : vector<8x128xf32>
    %83 = math.tanh %82 : vector<8x128xf32>
    %cst_35 = arith.constant 0.000000e+00 : f32
    %84 = vector.shape_cast %77 : vector<8x1xi1> to vector<8x1xi1>
    %85 = vector.broadcast %84 : vector<8x1xi1> to vector<8x128xi1>
    %86 = vector.broadcast %cst_35 : f32 to vector<8x128xf32>
    %87 = arith.select %85, %83, %86 : vector<8x128xi1>, vector<8x128xf32>
    %88 = arith.index_cast %75 : i32 to index
    %c0_36 = arith.constant 0 : index
    %c0_37 = arith.constant 0 : index
    %89 = vector.load %arg10[%88, %c0_36, %c0_37] : memref<8x8x128xf32, #tpu.memory_space<vmem>>, vector<1x8x128xf32>
    %90 = vector.shape_cast %89 : vector<1x8x128xf32> to vector<8x128xf32>
    %91 = vector.shape_cast %87 : vector<8x128xf32> to vector<1x8x128xf32>
    tpu.vector_store %arg10[%88, %c0_36, %c0_37], %91 {strides = array<i32>} : memref<8x8x128xf32, #tpu.memory_space<vmem>>, vector<1x8x128xf32>,
    %92 = vector.shape_cast %77 : vector<8x1xi1> to vector<8x1xi1>
    %93 = vector.broadcast %92 : vector<8x1xi1> to vector<8x128xi1>
    %94 = arith.select %93, %83, %74 : vector<8x128xi1>, vector<8x128xf32>
    %c4_i32 = arith.constant 4 : i32
    %95 = arith.addi %6, %c4_i32 : i32
    %96 = vector.broadcast %95 : i32 to vector<8x1xi32>
    %97 = arith.cmpi slt, %96, %0 : vector<8x1xi32>
    %98 = arith.index_cast %c4_i32 : i32 to index
    %c0_38 = arith.constant 0 : index
    %c0_39 = arith.constant 0 : index
    %99 = vector.load %arg9[%98, %c0_38, %c0_39] : memref<8x8x128xf32, #tpu.memory_space<vmem>>, vector<1x8x128xf32>
    %100 = vector.shape_cast %99 : vector<1x8x128xf32> to vector<8x128xf32>
    %cst_40 = arith.constant dense<0.000000e+00> : vector<8x128xf32>
    %101 = tpu.matmul %94, %2, %cst_40 {dimension_numbers = #tpu.dot_dimension_numbers<[1], [0], [0], [1], [0, 0, 1, 1], [], []>} : vector<8x128xf32>, vector<128x128xf32>, vector<8x128xf32> -> vector<8x128xf32>
    %102 = arith.addf %100, %101 : vector<8x128xf32>
    %103 = math.tanh %102 : vector<8x128xf32>
    %cst_41 = arith.constant 0.000000e+00 : f32
    %104 = vector.shape_cast %97 : vector<8x1xi1> to vector<8x1xi1>
    %105 = vector.broadcast %104 : vector<8x1xi1> to vector<8x128xi1>
    %106 = vector.broadcast %cst_41 : f32 to vector<8x128xf32>
    %107 = arith.select %105, %103, %106 : vector<8x128xi1>, vector<8x128xf32>
    %108 = arith.index_cast %95 : i32 to index
    %c0_42 = arith.constant 0 : index
    %c0_43 = arith.constant 0 : index
    %109 = vector.load %arg10[%108, %c0_42, %c0_43] : memref<8x8x128xf32, #tpu.memory_space<vmem>>, vector<1x8x128xf32>
    %110 = vector.shape_cast %109 : vector<1x8x128xf32> to vector<8x128xf32>
    %111 = vector.shape_cast %107 : vector<8x128xf32> to vector<1x8x128xf32>
    tpu.vector_store %arg10[%108, %c0_42, %c0_43], %111 {strides = array<i32>} : memref<8x8x128xf32, #tpu.memory_space<vmem>>, vector<1x8x128xf32>,
    %112 = vector.shape_cast %97 : vector<8x1xi1> to vector<8x1xi1>
    %113 = vector.broadcast %112 : vector<8x1xi1> to vector<8x128xi1>
    %114 = arith.select %113, %103, %94 : vector<8x128xi1>, vector<8x128xf32>
    %c5_i32 = arith.constant 5 : i32
    %115 = arith.addi %6, %c5_i32 : i32
    %116 = vector.broadcast %115 : i32 to vector<8x1xi32>
    %117 = arith.cmpi slt, %116, %0 : vector<8x1xi32>
    %118 = arith.index_cast %c5_i32 : i32 to index
    %c0_44 = arith.constant 0 : index
    %c0_45 = arith.constant 0 : index
    %119 = vector.load %arg9[%118, %c0_44, %c0_45] : memref<8x8x128xf32, #tpu.memory_space<vmem>>, vector<1x8x128xf32>
    %120 = vector.shape_cast %119 : vector<1x8x128xf32> to vector<8x128xf32>
    %cst_46 = arith.constant dense<0.000000e+00> : vector<8x128xf32>
    %121 = tpu.matmul %114, %2, %cst_46 {dimension_numbers = #tpu.dot_dimension_numbers<[1], [0], [0], [1], [0, 0, 1, 1], [], []>} : vector<8x128xf32>, vector<128x128xf32>, vector<8x128xf32> -> vector<8x128xf32>
    %122 = arith.addf %120, %121 : vector<8x128xf32>
    %123 = math.tanh %122 : vector<8x128xf32>
    %cst_47 = arith.constant 0.000000e+00 : f32
    %124 = vector.shape_cast %117 : vector<8x1xi1> to vector<8x1xi1>
    %125 = vector.broadcast %124 : vector<8x1xi1> to vector<8x128xi1>
    %126 = vector.broadcast %cst_47 : f32 to vector<8x128xf32>
    %127 = arith.select %125, %123, %126 : vector<8x128xi1>, vector<8x128xf32>
    %128 = arith.index_cast %115 : i32 to index
    %c0_48 = arith.constant 0 : index
    %c0_49 = arith.constant 0 : index
    %129 = vector.load %arg10[%128, %c0_48, %c0_49] : memref<8x8x128xf32, #tpu.memory_space<vmem>>, vector<1x8x128xf32>
    %130 = vector.shape_cast %129 : vector<1x8x128xf32> to vector<8x128xf32>
    %131 = vector.shape_cast %127 : vector<8x128xf32> to vector<1x8x128xf32>
    tpu.vector_store %arg10[%128, %c0_48, %c0_49], %131 {strides = array<i32>} : memref<8x8x128xf32, #tpu.memory_space<vmem>>, vector<1x8x128xf32>,
    %132 = vector.shape_cast %117 : vector<8x1xi1> to vector<8x1xi1>
    %133 = vector.broadcast %132 : vector<8x1xi1> to vector<8x128xi1>
    %134 = arith.select %133, %123, %114 : vector<8x128xi1>, vector<8x128xf32>
    %c6_i32 = arith.constant 6 : i32
    %135 = arith.addi %6, %c6_i32 : i32
    %136 = vector.broadcast %135 : i32 to vector<8x1xi32>
    %137 = arith.cmpi slt, %136, %0 : vector<8x1xi32>
    %138 = arith.index_cast %c6_i32 : i32 to index
    %c0_50 = arith.constant 0 : index
    %c0_51 = arith.constant 0 : index
    %139 = vector.load %arg9[%138, %c0_50, %c0_51] : memref<8x8x128xf32, #tpu.memory_space<vmem>>, vector<1x8x128xf32>
    %140 = vector.shape_cast %139 : vector<1x8x128xf32> to vector<8x128xf32>
    %cst_52 = arith.constant dense<0.000000e+00> : vector<8x128xf32>
    %141 = tpu.matmul %134, %2, %cst_52 {dimension_numbers = #tpu.dot_dimension_numbers<[1], [0], [0], [1], [0, 0, 1, 1], [], []>} : vector<8x128xf32>, vector<128x128xf32>, vector<8x128xf32> -> vector<8x128xf32>
    %142 = arith.addf %140, %141 : vector<8x128xf32>
    %143 = math.tanh %142 : vector<8x128xf32>
    %cst_53 = arith.constant 0.000000e+00 : f32
    %144 = vector.shape_cast %137 : vector<8x1xi1> to vector<8x1xi1>
    %145 = vector.broadcast %144 : vector<8x1xi1> to vector<8x128xi1>
    %146 = vector.broadcast %cst_53 : f32 to vector<8x128xf32>
    %147 = arith.select %145, %143, %146 : vector<8x128xi1>, vector<8x128xf32>
    %148 = arith.index_cast %135 : i32 to index
    %c0_54 = arith.constant 0 : index
    %c0_55 = arith.constant 0 : index
    %149 = vector.load %arg10[%148, %c0_54, %c0_55] : memref<8x8x128xf32, #tpu.memory_space<vmem>>, vector<1x8x128xf32>
    %150 = vector.shape_cast %149 : vector<1x8x128xf32> to vector<8x128xf32>
    %151 = vector.shape_cast %147 : vector<8x128xf32> to vector<1x8x128xf32>
    tpu.vector_store %arg10[%148, %c0_54, %c0_55], %151 {strides = array<i32>} : memref<8x8x128xf32, #tpu.memory_space<vmem>>, vector<1x8x128xf32>,
    %152 = vector.shape_cast %137 : vector<8x1xi1> to vector<8x1xi1>
    %153 = vector.broadcast %152 : vector<8x1xi1> to vector<8x128xi1>
    %154 = arith.select %153, %143, %134 : vector<8x128xi1>, vector<8x128xf32>
    %c7_i32 = arith.constant 7 : i32
    %155 = arith.addi %6, %c7_i32 : i32
    %156 = vector.broadcast %155 : i32 to vector<8x1xi32>
    %157 = arith.cmpi slt, %156, %0 : vector<8x1xi32>
    %158 = arith.index_cast %c7_i32 : i32 to index
    %c0_56 = arith.constant 0 : index
    %c0_57 = arith.constant 0 : index
    %159 = vector.load %arg9[%158, %c0_56, %c0_57] : memref<8x8x128xf32, #tpu.memory_space<vmem>>, vector<1x8x128xf32>
    %160 = vector.shape_cast %159 : vector<1x8x128xf32> to vector<8x128xf32>
    %cst_58 = arith.constant dense<0.000000e+00> : vector<8x128xf32>
    %161 = tpu.matmul %154, %2, %cst_58 {dimension_numbers = #tpu.dot_dimension_numbers<[1], [0], [0], [1], [0, 0, 1, 1], [], []>} : vector<8x128xf32>, vector<128x128xf32>, vector<8x128xf32> -> vector<8x128xf32>
    %162 = arith.addf %160, %161 : vector<8x128xf32>
    %163 = math.tanh %162 : vector<8x128xf32>
    %cst_59 = arith.constant 0.000000e+00 : f32
    %164 = vector.shape_cast %157 : vector<8x1xi1> to vector<8x1xi1>
    %165 = vector.broadcast %164 : vector<8x1xi1> to vector<8x128xi1>
    %166 = vector.broadcast %cst_59 : f32 to vector<8x128xf32>
    %167 = arith.select %165, %163, %166 : vector<8x128xi1>, vector<8x128xf32>
    %168 = arith.index_cast %155 : i32 to index
    %c0_60 = arith.constant 0 : index
    %c0_61 = arith.constant 0 : index
    %169 = vector.load %arg10[%168, %c0_60, %c0_61] : memref<8x8x128xf32, #tpu.memory_space<vmem>>, vector<1x8x128xf32>
    %170 = vector.shape_cast %169 : vector<1x8x128xf32> to vector<8x128xf32>
    %171 = vector.shape_cast %167 : vector<8x128xf32> to vector<1x8x128xf32>
    tpu.vector_store %arg10[%168, %c0_60, %c0_61], %171 {strides = array<i32>} : memref<8x8x128xf32, #tpu.memory_space<vmem>>, vector<1x8x128xf32>,
    %172 = vector.shape_cast %157 : vector<8x1xi1> to vector<8x1xi1>
    %173 = vector.broadcast %172 : vector<8x1xi1> to vector<8x128xi1>
    %174 = arith.select %173, %163, %154 : vector<8x128xi1>, vector<8x128xf32>
    %c8_i32_62 = arith.constant 8 : i32
    %c1_i32_63 = arith.constant 1 : i32
    %c0_64 = arith.constant 0 : index
    %c0_65 = arith.constant 0 : index
    %175 = vector.load %arg12[%c0_64, %c0_65] : memref<8x128xf32, #tpu.memory_space<vmem>>, vector<8x128xf32>
    tpu.vector_store %arg12[%c0_64, %c0_65], %174 {strides = array<i32>} : memref<8x128xf32, #tpu.memory_space<vmem>>, vector<8x128xf32>,
    %c0_i32_66 = arith.constant 0 : i32
    %c8_i32_67 = arith.constant 8 : i32
    %176 = arith.muli %c0_i32_66, %c8_i32_67 : i32
    %177 = tpu.assume_multiple %176, 8 : i32
    %178 = arith.index_cast %177 : i32 to index
    %c0_68 = arith.constant 0 : index
    %c0_69 = arith.constant 0 : index
    %179 = vector.load %arg10[%178, %c0_68, %c0_69] : memref<8x8x128xf32, #tpu.memory_space<vmem>>, vector<8x8x128xf32>
    %c0_70 = arith.constant 0 : index
    %c0_71 = arith.constant 0 : index
    %180 = vector.load %arg12[%c0_70, %c0_71] : memref<8x128xf32, #tpu.memory_space<vmem>>, vector<8x128xf32>
    %181 = vector.shape_cast %180 : vector<8x128xf32> to vector<1x8x128xf32>
    %182 = vector.broadcast %181 : vector<1x8x128xf32> to vector<8x8x128xf32>
    %183 = arith.mulf %179, %182 : vector<8x8x128xf32>
    %cst_72 = arith.constant dense<0.000000e+00> : vector<8x8xf32>
    %184 = vector.multi_reduction <add>, %183, %cst_72 [2] : vector<8x8x128xf32> to vector<8x8xf32>
    %185 = arith.index_cast %177 : i32 to index
    %c0_73 = arith.constant 0 : index
    %186 = vector.load %arg11[%185, %c0_73] : memref<8x8xf32, #tpu.memory_space<vmem>>, vector<8x8xf32>
    tpu.vector_store %arg11[%185, %c0_73], %184 {strides = array<i32>} : memref<8x8xf32, #tpu.memory_space<vmem>>, vector<8x8xf32>,
    %c1_i32_74 = arith.constant 1 : i32
    %c0_75 = arith.constant 0 : index
    %c0_76 = arith.constant 0 : index
    %187 = vector.load %arg11[%c0_75, %c0_76] : memref<8x8xf32, #tpu.memory_space<vmem>>, vector<8x8xf32>
    %cst_77 = arith.constant dense<0xFF800000> : vector<8xf32>
    %188 = vector.multi_reduction <maximumf>, %187, %cst_77 [0] : vector<8x8xf32> to vector<8xf32>
    %189 = vector.shape_cast %188 : vector<8xf32> to vector<1x8xf32>
    %190 = vector.broadcast %189 : vector<1x8xf32> to vector<8x8xf32>
    %191 = arith.subf %187, %190 : vector<8x8xf32>
    %192 = math.exp %191 : vector<8x8xf32>
    %cst_78 = arith.constant dense<0.000000e+00> : vector<8xf32>
    %193 = vector.multi_reduction <add>, %192, %cst_78 [0] : vector<8x8xf32> to vector<8xf32>
    %194 = vector.shape_cast %193 : vector<8xf32> to vector<1x8xf32>
    %195 = vector.broadcast %194 : vector<1x8xf32> to vector<8x8xf32>
    %196 = arith.divf %192, %195 : vector<8x8xf32>
    %c0_79 = arith.constant 0 : index
    %c0_80 = arith.constant 0 : index
    %197 = vector.load %arg11[%c0_79, %c0_80] : memref<8x8xf32, #tpu.memory_space<vmem>>, vector<8x8xf32>
    tpu.vector_store %arg11[%c0_79, %c0_80], %196 {strides = array<i32>} : memref<8x8xf32, #tpu.memory_space<vmem>>, vector<8x8xf32>,
    %cst_81 = arith.constant 0.000000e+00 : f32
    %198 = vector.broadcast %cst_81 : f32 to vector<8x128xf32>
    %c0_82 = arith.constant 0 : index
    %c0_83 = arith.constant 0 : index
    %199 = vector.load %arg13[%c0_82, %c0_83] : memref<8x128xf32, #tpu.memory_space<vmem>>, vector<8x128xf32>
    tpu.vector_store %arg13[%c0_82, %c0_83], %198 {strides = array<i32>} : memref<8x128xf32, #tpu.memory_space<vmem>>, vector<8x128xf32>,
    %c0_i32_84 = arith.constant 0 : i32
    %c8_i32_85 = arith.constant 8 : i32
    %200 = arith.muli %c0_i32_84, %c8_i32_85 : i32
    %201 = tpu.assume_multiple %200, 8 : i32
    %202 = arith.index_cast %201 : i32 to index
    %c0_86 = arith.constant 0 : index
    %c0_87 = arith.constant 0 : index
    %203 = vector.load %arg10[%202, %c0_86, %c0_87] : memref<8x8x128xf32, #tpu.memory_space<vmem>>, vector<8x8x128xf32>
    %204 = arith.index_cast %201 : i32 to index
    %c0_88 = arith.constant 0 : index
    %205 = vector.load %arg11[%204, %c0_88] : memref<8x8xf32, #tpu.memory_space<vmem>>, vector<8x8xf32>
    %c0_89 = arith.constant 0 : index
    %c0_90 = arith.constant 0 : index
    %206 = vector.load %arg13[%c0_89, %c0_90] : memref<8x128xf32, #tpu.memory_space<vmem>>, vector<8x128xf32>
    %207 = vector.shape_cast %205 : vector<8x8xf32> to vector<8x8x1xf32>
    %208 = vector.broadcast %207 : vector<8x8x1xf32> to vector<8x8x128xf32>
    %209 = arith.mulf %203, %208 : vector<8x8x128xf32>
    %cst_91 = arith.constant dense<0.000000e+00> : vector<8x128xf32>
    %210 = vector.multi_reduction <add>, %209, %cst_91 [0] : vector<8x8x128xf32> to vector<8x128xf32>
    %211 = arith.addf %206, %210 : vector<8x128xf32>
    %c0_92 = arith.constant 0 : index
    %c0_93 = arith.constant 0 : index
    %212 = vector.load %arg13[%c0_92, %c0_93] : memref<8x128xf32, #tpu.memory_space<vmem>>, vector<8x128xf32>
    tpu.vector_store %arg13[%c0_92, %c0_93], %211 {strides = array<i32>} : memref<8x128xf32, #tpu.memory_space<vmem>>, vector<8x128xf32>,
    %c1_i32_94 = arith.constant 1 : i32
    %c0_95 = arith.constant 0 : index
    %c0_96 = arith.constant 0 : index
    %213 = vector.load %arg13[%c0_95, %c0_96] : memref<8x128xf32, #tpu.memory_space<vmem>>, vector<8x128xf32>
    %c0_97 = arith.constant 0 : index
    %c0_98 = arith.constant 0 : index
    %214 = vector.load %arg6[%c0_97, %c0_98] : memref<128x128xf32, #tpu.memory_space<vmem>>, vector<128x128xf32>
    %cst_99 = arith.constant dense<0.000000e+00> : vector<8x128xf32>
    %215 = tpu.matmul %213, %214, %cst_99 {dimension_numbers = #tpu.dot_dimension_numbers<[1], [0], [0], [1], [0, 0, 1, 1], [], []>} : vector<8x128xf32>, vector<128x128xf32>, vector<8x128xf32> -> vector<8x128xf32>
    %c0_100 = arith.constant 0 : index
    %c0_101 = arith.constant 0 : index
    %216 = vector.load %arg7[%c0_100, %c0_101] : memref<1x128xf32, #tpu.memory_space<vmem>>, vector<1x128xf32>
    %217 = vector.broadcast %216 : vector<1x128xf32> to vector<8x128xf32>
    %218 = arith.addf %215, %217 : vector<8x128xf32>
    %219 = tpu.iota {dimensions = array<i32: 1>} : vector<8x128xi32>
    %c4_i32_102 = arith.constant 4 : i32
    %220 = vector.broadcast %c4_i32_102 : i32 to vector<8x128xi32>
    %221 = arith.cmpi slt, %219, %220 : vector<8x128xi32>
    %cst_103 = arith.constant -1.000000e+30 : f32
    %222 = vector.broadcast %cst_103 : f32 to vector<8x128xf32>
    %223 = arith.select %221, %218, %222 : vector<8x128xi1>, vector<8x128xf32>
    %cst_104 = arith.constant dense<0xFF800000> : vector<8xf32>
    %224 = vector.multi_reduction <maximumf>, %223, %cst_104 [1] : vector<8x128xf32> to vector<8xf32>
    %225 = vector.shape_cast %224 : vector<8xf32> to vector<8x1xf32>
    %226 = vector.broadcast %225 : vector<8x1xf32> to vector<8x128xf32>
    %227 = arith.subf %223, %226 : vector<8x128xf32>
    %228 = math.exp %227 : vector<8x128xf32>
    %cst_105 = arith.constant dense<0.000000e+00> : vector<8xf32>
    %229 = vector.multi_reduction <add>, %228, %cst_105 [1] : vector<8x128xf32> to vector<8xf32>
    %230 = vector.shape_cast %229 : vector<8xf32> to vector<8x1xf32>
    %231 = math.log %230 : vector<8x1xf32>
    %232 = vector.broadcast %231 : vector<8x1xf32> to vector<8x128xf32>
    %233 = arith.subf %227, %232 : vector<8x128xf32>
    %c0_106 = arith.constant 0 : index
    %c0_107 = arith.constant 0 : index
    %234 = vector.load %arg8[%c0_106, %c0_107] : memref<8x128xf32, #tpu.memory_space<vmem>>, vector<8x128xf32>
    tpu.vector_store %arg8[%c0_106, %c0_107], %233 {strides = array<i32>} : memref<8x128xf32, #tpu.memory_space<vmem>>, vector<8x128xf32>,
    return
  }
  func.func @transform_0(%arg0: i32) -> (i32, i32, i32) {
    %c0_i32 = arith.constant 0 : i32
    %c0_i32_0 = arith.constant 0 : i32
    %c0_i32_1 = arith.constant 0 : i32
    return %c0_i32, %arg0, %c0_i32_0 : i32, i32, i32
  }
  func.func @transform_1(%arg0: i32) -> (i32, i32) {
    %c0_i32 = arith.constant 0 : i32
    %c0_i32_0 = arith.constant 0 : i32
    return %arg0, %c0_i32 : i32, i32
  }
  func.func @transform_2(%arg0: i32) -> (i32, i32) {
    %c0_i32 = arith.constant 0 : i32
    %c0_i32_0 = arith.constant 0 : i32
    %c0_i32_1 = arith.constant 0 : i32
    return %c0_i32, %c0_i32_0 : i32, i32
  }
  func.func @transform_3(%arg0: i32) -> (i32, i32) {
    %c0_i32 = arith.constant 0 : i32
    %c0_i32_0 = arith.constant 0 : i32
    %c0_i32_1 = arith.constant 0 : i32
    return %c0_i32, %c0_i32_0 : i32, i32
  }
  func.func @transform_4(%arg0: i32) -> (i32, i32) {
    %c0_i32 = arith.constant 0 : i32
    %c0_i32_0 = arith.constant 0 : i32
    %c0_i32_1 = arith.constant 0 : i32
    return %c0_i32, %c0_i32_0 : i32, i32
  }
  func.func @transform_5(%arg0: i32) -> (i32, i32) {
    %c0_i32 = arith.constant 0 : i32
    %c0_i32_0 = arith.constant 0 : i32
    %c0_i32_1 = arith.constant 0 : i32
    return %c0_i32, %c0_i32_0 : i32, i32
  }
  func.func @transform_6(%arg0: i32) -> (i32, i32) {
    %c0_i32 = arith.constant 0 : i32
    %c0_i32_0 = arith.constant 0 : i32
    %c0_i32_1 = arith.constant 0 : i32
    return %c0_i32, %c0_i32_0 : i32, i32
  }
  func.func @transform_7(%arg0: i32) -> (i32, i32) {
    %c0_i32 = arith.constant 0 : i32
    %c0_i32_0 = arith.constant 0 : i32
    return %arg0, %c0_i32 : i32, i32
  }
}

</mosaic_0001>

<llo_original>
// kernel: tpu_custom_call.1
$region0: #{tpu_custom_call.1}
  #allocation0 [shape = 'u32[]', space=smem, size = 0x4, offset = 0x4, fixed_abs, tag = 'smem constant byte address 0x4 - core index']
  #allocation1 [shape = 'u32[144,128]{1,0:T(1,128)}', space=vmem, size = 0x12000, scoped, tag = 'internal scratch']
  #allocation2 [shape = 'f32[8,8,128]{2,1,0:T(8,128)}', space=vmem, size = 0x8000, scoped, tag = 'scratch operand']
  #allocation3 [shape = 'f32[8,8,128]{2,1,0:T(8,128)}', space=vmem, size = 0x8000, scoped, tag = 'scratch operand']
  #allocation4 [shape = 'f32[8,8]{1,0:T(8,128)}', space=vmem, size = 0x1000, scoped, tag = 'scratch operand']
  #allocation5 [shape = 'f32[8,128]{1,0:T(8,128)}', space=vmem, size = 0x1000, scoped, tag = 'scratch operand']
  #allocation6 [shape = 'f32[8,128]{1,0:T(8,128)}', space=vmem, size = 0x1000, scoped, tag = 'scratch operand']
  %s0 = inlined_call_operand.hbm [shape: f32[8,8,128], index: 0, kind: input, shape index: {}]
  %s1 = inlined_call_operand.vmem [shape: s32[8,1], index: 1, kind: input, shape index: {}]
  %s2 = inlined_call_operand.hbm [shape: f32[128,128], index: 2, kind: input, shape index: {}]
  %s3 = inlined_call_operand.hbm [shape: f32[128,128], index: 3, kind: input, shape index: {}]
  %s4 = inlined_call_operand.vmem [shape: f32[1,128], index: 4, kind: input, shape index: {}]
  %s5 = inlined_call_operand.hbm [shape: f32[128,128], index: 5, kind: input, shape index: {}]
  %s6 = inlined_call_operand.vmem [shape: f32[1,128], index: 6, kind: input, shape index: {}]
  %s7 = inlined_call_operand.hbm [shape: f32[8,128], index: 7, kind: output, shape index: {}]
  %s8 = sld [smem:[#allocation0]]
  $region54: #{tpu_custom_call.1} parent=0
    _
  %s10 = ssub.s32 1, %s8
  %s11 = scalar_select 0, %s10, %s8
  $region1: #{tpu_custom_call.1} parent=0
    #allocation7 [shape = 'u8[32768]{0}', space=vmem, size = 0x8000, scoped, tag = 'input window, operand 0, single buffered']
    #allocation8 [shape = 's32[1]{0}', space=sflag, size = 0x4, scoped, tag = 'scoped memory for tpu_custom_call.1']
    #allocation9 [shape = 's32[1]{0}', space=sflag, size = 0x4, scoped, tag = 'scoped memory for tpu_custom_call.1']
    #allocation10 [shape = 'u8[65536]{0}', space=vmem, size = 0x10000, scoped, tag = 'input window, operand 2, single buffered']
    #allocation11 [shape = 's32[1]{0}', space=sflag, size = 0x4, scoped, tag = 'scoped memory for tpu_custom_call.1']
    #allocation12 [shape = 'u8[65536]{0}', space=vmem, size = 0x10000, scoped, tag = 'input window, operand 3, single buffered']
    #allocation13 [shape = 'u8[65536]{0}', space=vmem, size = 0x10000, scoped, tag = 'input window, operand 5, single buffered']
    #allocation14 [shape = 's32[1]{0}', space=sflag, size = 0x4, scoped, tag = 'scoped memory for tpu_custom_call.1']
    #allocation15 [shape = 'u8[4096]{0}', space=vmem, size = 0x1000, scoped, tag = 'output window, operand 0, single buffered']
    %12 = vsyncpa [#allocation8], 0
    %13 = vsyncpa [#allocation11], 0
    %14 = vsyncpa [#allocation14], 0
    %15 = vsyncpa [#allocation9], 0
    // Predicated region
    $region2: #{tpu_custom_call.1} parent=1 // pred_check
      _
    $region3: #{tpu_custom_call.1} parent=1 // pred_check_branch
      %17 = sbr.rel (0) target = $region5
    $region4: #{tpu_custom_call.1} parent=1 // pred_region
      %s19 = ssub.s32 1024, 1024
      %20 = vsyncadd [#allocation8], %s19
      %s21 = sshll.u32 [#allocation7], 4
      %s22 = int_to_ptr.vmem [resolvable:$true] %s21
      %27 = dma.hbm_to_vmem [thread:$0]  %s0, 1024, %s22, [#allocation8], 128, 128, 8
    $region5: #{tpu_custom_call.1} parent=1 // pred_fallthru
      _
    // Predicated region
    $region6: #{tpu_custom_call.1} parent=1 // pred_check
      _
    $region7: #{tpu_custom_call.1} parent=1 // pred_check_branch
      %29 = sbr.rel (0) target = $region9
    $region8: #{tpu_custom_call.1} parent=1 // pred_region
      _
    $region9: #{tpu_custom_call.1} parent=1 // pred_fallthru
      _
    // Predicated region
    $region10: #{tpu_custom_call.1} parent=1 // pred_check
      _
    $region11: #{tpu_custom_call.1} parent=1 // pred_check_branch
      %31 = sbr.rel (0) target = $region13
    $region12: #{tpu_custom_call.1} parent=1 // pred_region
      %s33 = ssub.s32 2048, 2048
      %34 = vsyncadd [#allocation11], %s33
      %s35 = sshll.u32 [#allocation10], 4
      %s36 = int_to_ptr.vmem [resolvable:$true] %s35
      %41 = dma.hbm_to_vmem [thread:$0]  %s2, 2048, %s36, [#allocation11], 128, 128, 8
    $region13: #{tpu_custom_call.1} parent=1 // pred_fallthru
      _
    // Predicated region
    $region14: #{tpu_custom_call.1} parent=1 // pred_check
      _
    $region15: #{tpu_custom_call.1} parent=1 // pred_check_branch
      %43 = sbr.rel (0) target = $region17
    $region16: #{tpu_custom_call.1} parent=1 // pred_region
      %s45 = ssub.s32 2048, 2048
      %46 = vsyncadd [#allocation11], %s45
      %s47 = sshll.u32 [#allocation12], 4
      %s48 = int_to_ptr.vmem [resolvable:$true] %s47
      %53 = dma.hbm_to_vmem [thread:$0]  %s3, 2048, %s48, [#allocation11], 128, 128, 8
    $region17: #{tpu_custom_call.1} parent=1 // pred_fallthru
      _
    // Predicated region
    $region18: #{tpu_custom_call.1} parent=1 // pred_check
      _
    $region19: #{tpu_custom_call.1} parent=1 // pred_check_branch
      %55 = sbr.rel (0) target = $region21
    $region20: #{tpu_custom_call.1} parent=1 // pred_region
      _
    $region21: #{tpu_custom_call.1} parent=1 // pred_fallthru
      _
    // Predicated region
    $region22: #{tpu_custom_call.1} parent=1 // pred_check
      _
    $region23: #{tpu_custom_call.1} parent=1 // pred_check_branch
      %57 = sbr.rel (0) target = $region25
    $region24: #{tpu_custom_call.1} parent=1 // pred_region
      %s59 = ssub.s32 2048, 2048
      %60 = vsyncadd [#allocation14], %s59
      %s61 = sshll.u32 [#allocation13], 4
      %s62 = int_to_ptr.vmem [resolvable:$true] %s61
      %67 = dma.hbm_to_vmem [thread:$0]  %s5, 2048, %s62, [#allocation14], 128, 128, 8
    $region25: #{tpu_custom_call.1} parent=1 // pred_fallthru
      _
    // Predicated region
    $region26: #{tpu_custom_call.1} parent=1 // pred_check
      _
    $region27: #{tpu_custom_call.1} parent=1 // pred_check_branch
      %69 = sbr.rel (0) target = $region29
    $region28: #{tpu_custom_call.1} parent=1 // pred_region
      _
    $region29: #{tpu_custom_call.1} parent=1 // pred_fallthru
      _
    // Predicated region
    $region30: #{tpu_custom_call.1} parent=1 // pred_check
      _
    $region31: #{tpu_custom_call.1} parent=1 // pred_check_branch
      %71 = sbr.rel (0) target = $region33
    $region32: #{tpu_custom_call.1} parent=1 // pred_region
      %72 = dma.done [#allocation8], 1024
    $region33: #{tpu_custom_call.1} parent=1 // pred_fallthru
      _
    // Predicated region
    $region34: #{tpu_custom_call.1} parent=1 // pred_check
      _
    $region35: #{tpu_custom_call.1} parent=1 // pred_check_branch
      %74 = sbr.rel (0) target = $region37
    $region36: #{tpu_custom_call.1} parent=1 // pred_region
      %75 = dma.done [#allocation11], 2048
    $region37: #{tpu_custom_call.1} parent=1 // pred_fallthru
      _
    // Predicated region
    $region38: #{tpu_custom_call.1} parent=1 // pred_check
      _
    $region39: #{tpu_custom_call.1} parent=1 // pred_check_branch
      %77 = sbr.rel (0) target = $region41
    $region40: #{tpu_custom_call.1} parent=1 // pred_region
      %78 = dma.done [#allocation11], 2048
    $region41: #{tpu_custom_call.1} parent=1 // pred_fallthru
      _
    // Predicated region
    $region42: #{tpu_custom_call.1} parent=1 // pred_check
      _
    $region43: #{tpu_custom_call.1} parent=1 // pred_check_branch
      %80 = sbr.rel (0) target = $region45
    $region44: #{tpu_custom_call.1} parent=1 // pred_region
      %81 = dma.done [#allocation14], 2048
    $region45: #{tpu_custom_call.1} parent=1 // pred_fallthru
      _
    %v82 = vld [vmem:[%s1] sm:$0xff]
    %v83 = vld [vmem:[#allocation10] sm:$0xff]
    %v84 = vld [vmem:[#allocation10 + $0x8] sm:$0xff]
    %v85 = vld [vmem:[#allocation10 + $0x10] sm:$0xff]
    %v86 = vld [vmem:[#allocation10 + $0x18] sm:$0xff]
    %v87 = vld [vmem:[#allocation10 + $0x20] sm:$0xff]
    %v88 = vld [vmem:[#allocation10 + $0x28] sm:$0xff]
    %v89 = vld [vmem:[#allocation10 + $0x30] sm:$0xff]
    %v90 = vld [vmem:[#allocation10 + $0x38] sm:$0xff]
    %v91 = vld [vmem:[#allocation10 + $0x40] sm:$0xff]
    %v92 = vld [vmem:[#allocation10 + $0x48] sm:$0xff]
    %v93 = vld [vmem:[#allocation10 + $0x50] sm:$0xff]
    %v94 = vld [vmem:[#allocation10 + $0x58] sm:$0xff]
    %v95 = vld [vmem:[#allocation10 + $0x60] sm:$0xff]
    %v96 = vld [vmem:[#allocation10 + $0x68] sm:$0xff]
    %v97 = vld [vmem:[#allocation10 + $0x70] sm:$0xff]
    %v98 = vld [vmem:[#allocation10 + $0x78] sm:$0xff]
    %v99 = vld [vmem:[#allocation12] sm:$0xff]
    %v100 = vld [vmem:[#allocation12 + $0x8] sm:$0xff]
    %v101 = vld [vmem:[#allocation12 + $0x10] sm:$0xff]
    %v102 = vld [vmem:[#allocation12 + $0x18] sm:$0xff]
    %v103 = vld [vmem:[#allocation12 + $0x20] sm:$0xff]
    %v104 = vld [vmem:[#allocation12 + $0x28] sm:$0xff]
    %v105 = vld [vmem:[#allocation12 + $0x30] sm:$0xff]
    %v106 = vld [vmem:[#allocation12 + $0x38] sm:$0xff]
    %v107 = vld [vmem:[#allocation12 + $0x40] sm:$0xff]
    %v108 = vld [vmem:[#allocation12 + $0x48] sm:$0xff]
    %v109 = vld [vmem:[#allocation12 + $0x50] sm:$0xff]
    %v110 = vld [vmem:[#allocation12 + $0x58] sm:$0xff]
    %v111 = vld [vmem:[#allocation12 + $0x60] sm:$0xff]
    %v112 = vld [vmem:[#allocation12 + $0x68] sm:$0xff]
    %v113 = vld [vmem:[#allocation12 + $0x70] sm:$0xff]
    %v114 = vld [vmem:[#allocation12 + $0x78] sm:$0xff]
    %v115 = vld [vmem:[%s4] sm:$0x1]
    %s116 = smul.u32 0, 8
    %s117 = scalar_lea.vmem [#allocation7], %s116
    %v118 = vld [vmem:[%s117] sm:$0xff]
    %v119 = vld [vmem:[%s117 + $0x8] sm:$0xff]
    %v120 = vld [vmem:[%s117 + $0x10] sm:$0xff]
    %v121 = vld [vmem:[%s117 + $0x18] sm:$0xff]
    %v122 = vld [vmem:[%s117 + $0x20] sm:$0xff]
    %v123 = vld [vmem:[%s117 + $0x28] sm:$0xff]
    %v124 = vld [vmem:[%s117 + $0x30] sm:$0xff]
    %v125 = vld [vmem:[%s117 + $0x38] sm:$0xff]
    %v127 = vlaneseq
    %v128 = vshrl.u32 %v127, 7
    %v129 = vsub.s32 0, %v128
    %v130 = vrot.slane %v115, %v129
    %132 = vmatprep.subr.mxu0 0.0
    %133 = vmatpush1.msra.mxu0 %v83
    %134 = vmatprep.subr.mxu0 0.0
    %135 = vmatpush1.msra.mxu0 %v84
    %136 = vmatprep.subr.mxu0 0.0
    %137 = vmatpush1.msra.mxu0 %v85
    %138 = vmatprep.subr.mxu0 0.0
    %139 = vmatpush1.msra.mxu0 %v86
    %140 = vmatprep.subr.mxu0 0.0
    %141 = vmatpush1.msra.mxu0 %v87
    %142 = vmatprep.subr.mxu0 0.0
    %143 = vmatpush1.msra.mxu0 %v88
    %144 = vmatprep.subr.mxu0 0.0
    %145 = vmatpush1.msra.mxu0 %v89
    %146 = vmatprep.subr.mxu0 0.0
    %147 = vmatpush1.msra.mxu0 %v90
    %148 = vmatprep.subr.mxu0 0.0
    %149 = vmatpush1.msra.mxu0 %v91
    %150 = vmatprep.subr.mxu0 0.0
    %151 = vmatpush1.msra.mxu0 %v92
    %152 = vmatprep.subr.mxu0 0.0
    %153 = vmatpush1.msra.mxu0 %v93
    %154 = vmatprep.subr.mxu0 0.0
    %155 = vmatpush1.msra.mxu0 %v94
    %156 = vmatprep.subr.mxu0 0.0
    %157 = vmatpush1.msra.mxu0 %v95
    %158 = vmatprep.subr.mxu0 0.0
    %159 = vmatpush1.msra.mxu0 %v96
    %160 = vmatprep.subr.mxu0 0.0
    %161 = vmatpush1.msra.mxu0 %v97
    %162 = vmatprep.subr.mxu0 0.0
    %163 = vmatpush1.msra.mxu0 %v98
    %164 = vmatprep.subr.mxu0 0.0
    %165 = vmatpush1.msra.mxu0 0.0
    %166 = vmatprep.subr.mxu0 0.0
    %167 = vmatpush1.msra.mxu0 0.0
    %168 = vmatprep.subr.mxu0 0.0
    %169 = vmatpush1.msra.mxu0 0.0
    %170 = vmatprep.subr.mxu0 0.0
    %171 = vmatpush1.msra.mxu0 0.0
    %172 = vmatprep.subr.mxu0 0.0
    %173 = vmatpush1.msra.mxu0 0.0
    %174 = vmatprep.subr.mxu0 0.0
    %175 = vmatpush1.msra.mxu0 0.0
    %176 = vmatprep.subr.mxu0 0.0
    %177 = vmatpush1.msra.mxu0 0.0
    %178 = vmatprep.subr.mxu0 0.0
    %179 = vmatpush1.msra.mxu0 0.0
    %180 = vmatprep.subr.mxu0 0.0
    %181 = vmatpush1.msra.mxu0 0.0
    %182 = vmatprep.subr.mxu0 0.0
    %183 = vmatpush1.msra.mxu0 0.0
    %184 = vmatprep.subr.mxu0 0.0
    %185 = vmatpush1.msra.mxu0 0.0
    %186 = vmatprep.subr.mxu0 0.0
    %187 = vmatpush1.msra.mxu0 0.0
    %188 = vmatprep.subr.mxu0 0.0
    %189 = vmatpush1.msra.mxu0 0.0
    %190 = vmatprep.subr.mxu0 0.0
    %191 = vmatpush1.msra.mxu0 0.0
    %192 = vmatprep.subr.mxu0 0.0
    %193 = vmatpush1.msra.mxu0 0.0
    %194 = vmatprep.subr.mxu0 0.0
    %195 = vmatpush1.msra.mxu0 0.0
    %196 = vmatprep.mubr.f32.mxu0 0.0
    %197 = vmatmul.mubr.f32.gmra.mrb[0].mxu0 %v118
    %v198 = vpop.f32.mrb[0].mxu0
    %v199 = vadd.f32 %v130, %v198
    %v200 = vpop.f32.mrb[0].mxu0
    %201 = vmatprep.mubr.f32.mxu0 0.0
    %202 = vmatmul.mubr.f32.gmra.mrb[0].mxu0 %v119
    %v203 = vpop.f32.mrb[0].mxu0
    %v204 = vadd.f32 %v130, %v203
    %v205 = vpop.f32.mrb[0].mxu0
    %206 = vmatprep.mubr.f32.mxu0 0.0
    %207 = vmatmul.mubr.f32.gmra.mrb[0].mxu0 %v120
    %v208 = vpop.f32.mrb[0].mxu0
    %v209 = vadd.f32 %v130, %v208
    %v210 = vpop.f32.mrb[0].mxu0
    %211 = vmatprep.mubr.f32.mxu0 0.0
    %212 = vmatmul.mubr.f32.gmra.mrb[0].mxu0 %v121
    %v213 = vpop.f32.mrb[0].mxu0
    %v214 = vadd.f32 %v130, %v213
    %v215 = vpop.f32.mrb[0].mxu0
    %216 = vmatprep.mubr.f32.mxu0 0.0
    %217 = vmatmul.mubr.f32.gmra.mrb[0].mxu0 %v122
    %v218 = vpop.f32.mrb[0].mxu0
    %v219 = vadd.f32 %v130, %v218
    %v220 = vpop.f32.mrb[0].mxu0
    %221 = vmatprep.mubr.f32.mxu0 0.0
    %222 = vmatmul.mubr.f32.gmra.mrb[0].mxu0 %v123
    %v223 = vpop.f32.mrb[0].mxu0
    %v224 = vadd.f32 %v130, %v223
    %v225 = vpop.f32.mrb[0].mxu0
    %226 = vmatprep.mubr.f32.mxu0 0.0
    %227 = vmatmul.mubr.f32.gmra.mrb[0].mxu0 %v124
    %v228 = vpop.f32.mrb[0].mxu0
    %v229 = vadd.f32 %v130, %v228
    %v230 = vpop.f32.mrb[0].mxu0
    %231 = vmatprep.mubr.f32.mxu0 0.0
    %232 = vmatmul.mubr.f32.gmra.mrb[0].mxu0 %v125
    %v233 = vpop.f32.mrb[0].mxu0
    %v234 = vadd.f32 %v130, %v233
    %v235 = vpop.f32.mrb[0].mxu0
    %236 = vdwg.mxu0
    %237 = vst [vmem:[#allocation2] sm:$0xff] %v199
    %238 = vst [vmem:[#allocation2 + $0x8] sm:$0xff] %v204
    %239 = vst [vmem:[#allocation2 + $0x10] sm:$0xff] %v209
    %240 = vst [vmem:[#allocation2 + $0x18] sm:$0xff] %v214
    %241 = vst [vmem:[#allocation2 + $0x20] sm:$0xff] %v219
    %242 = vst [vmem:[#allocation2 + $0x28] sm:$0xff] %v224
    %243 = vst [vmem:[#allocation2 + $0x30] sm:$0xff] %v229
    %244 = vst [vmem:[#allocation2 + $0x38] sm:$0xff] %v234
    %v245 = vstv 0
    %vm246 = vcmp.lt.s32.totalorder %v245, %v82
    %v247 = vld [vmem:[#allocation2] sm:$0xff]
    %248 = vmatprep.subr.mxu0 0.0
    %249 = vmatpush1.msra.mxu0 %v99
    %250 = vmatprep.subr.mxu0 0.0
    %251 = vmatpush1.msra.mxu0 %v100
    %252 = vmatprep.subr.mxu0 0.0
    %253 = vmatpush1.msra.mxu0 %v101
    %254 = vmatprep.subr.mxu0 0.0
    %255 = vmatpush1.msra.mxu0 %v102
    %256 = vmatprep.subr.mxu0 0.0
    %257 = vmatpush1.msra.mxu0 %v103
    %258 = vmatprep.subr.mxu0 0.0
    %259 = vmatpush1.msra.mxu0 %v104
    %260 = vmatprep.subr.mxu0 0.0
    %261 = vmatpush1.msra.mxu0 %v105
    %262 = vmatprep.subr.mxu0 0.0
    %263 = vmatpush1.msra.mxu0 %v106
    %264 = vmatprep.subr.mxu0 0.0
    %265 = vmatpush1.msra.mxu0 %v107
    %266 = vmatprep.subr.mxu0 0.0
    %267 = vmatpush1.msra.mxu0 %v108
    %268 = vmatprep.subr.mxu0 0.0
    %269 = vmatpush1.msra.mxu0 %v109
    %270 = vmatprep.subr.mxu0 0.0
    %271 = vmatpush1.msra.mxu0 %v110
    %272 = vmatprep.subr.mxu0 0.0
    %273 = vmatpush1.msra.mxu0 %v111
    %274 = vmatprep.subr.mxu0 0.0
    %275 = vmatpush1.msra.mxu0 %v112
    %276 = vmatprep.subr.mxu0 0.0
    %277 = vmatpush1.msra.mxu0 %v113
    %278 = vmatprep.subr.mxu0 0.0
    %279 = vmatpush1.msra.mxu0 %v114
    %280 = vmatprep.subr.mxu0 0.0
    %281 = vmatpush1.msra.mxu0 0.0
    %282 = vmatprep.subr.mxu0 0.0
    %283 = vmatpush1.msra.mxu0 0.0
    %284 = vmatprep.subr.mxu0 0.0
    %285 = vmatpush1.msra.mxu0 0.0
    %286 = vmatprep.subr.mxu0 0.0
    %287 = vmatpush1.msra.mxu0 0.0
    %288 = vmatprep.subr.mxu0 0.0
    %289 = vmatpush1.msra.mxu0 0.0
    %290 = vmatprep.subr.mxu0 0.0
    %291 = vmatpush1.msra.mxu0 0.0
    %292 = vmatprep.subr.mxu0 0.0
    %293 = vmatpush1.msra.mxu0 0.0
    %294 = vmatprep.subr.mxu0 0.0
    %295 = vmatpush1.msra.mxu0 0.0
    %296 = vmatprep.subr.mxu0 0.0
    %297 = vmatpush1.msra.mxu0 0.0
    %298 = vmatprep.subr.mxu0 0.0
    %299 = vmatpush1.msra.mxu0 0.0
    %300 = vmatprep.subr.mxu0 0.0
    %301 = vmatpush1.msra.mxu0 0.0
    %302 = vmatprep.subr.mxu0 0.0
    %303 = vmatpush1.msra.mxu0 0.0
    %304 = vmatprep.subr.mxu0 0.0
    %305 = vmatpush1.msra.mxu0 0.0
    %306 = vmatprep.subr.mxu0 0.0
    %307 = vmatpush1.msra.mxu0 0.0
    %308 = vmatprep.subr.mxu0 0.0
    %309 = vmatpush1.msra.mxu0 0.0
    %310 = vmatprep.subr.mxu0 0.0
    %311 = vmatpush1.msra.mxu0 0.0
    %312 = vmatprep.mubr.f32.mxu0 0.0
    %313 = vmatmul.mubr.f32.gmra.mrb[0].mxu0 0.0
    %v314 = vpop.f32.mrb[0].mxu0
    %v315 = vadd.f32 0.0, %v314
    %v316 = vpop.f32.mrb[0].mxu0
    %317 = vdwg.mxu0
    %v318 = vadd.f32 %v247, %v315
    %v319 = vtanh.pop %v318
    %v320 = vsel %vm246, 1, 0
    %321 = vset.pattern.permute.xlu0 0
    %322 = vperm.xlu0 %321, %v320
    %v323 = vpop.permute.xlu0 %322
    %vm324 = vcmp.eq.s32.totalorder %v323, 1
    %v325 = vsel %vm324, %v319, 0.0
    %s326 = scalar_lea.vmem [#allocation3], %s116
    %327 = vst [vmem:[%s326] sm:$0xff] %v325
    %s328 = sadd.s32 0, 1
    %v329 = vstv %s328
    %vm330 = vcmp.lt.s32.totalorder %v329, %v82
    %s331 = scalar_lea.vmem [#allocation2], 8
    %v332 = vld [vmem:[%s331] sm:$0xff]
    %333 = vmatprep.subr.mxu0 0.0
    %334 = vmatpush1.msra.mxu0 %v99
    %335 = vmatprep.subr.mxu0 0.0
    %336 = vmatpush1.msra.mxu0 %v100
    %337 = vmatprep.subr.mxu0 0.0
    %338 = vmatpush1.msra.mxu0 %v101
    %339 = vmatprep.subr.mxu0 0.0
    %340 = vmatpush1.msra.mxu0 %v102
    %341 = vmatprep.subr.mxu0 0.0
    %342 = vmatpush1.msra.mxu0 %v103
    %343 = vmatprep.subr.mxu0 0.0
    %344 = vmatpush1.msra.mxu0 %v104
    %345 = vmatprep.subr.mxu0 0.0
    %346 = vmatpush1.msra.mxu0 %v105
    %347 = vmatprep.subr.mxu0 0.0
    %348 = vmatpush1.msra.mxu0 %v106
    %349 = vmatprep.subr.mxu0 0.0
    %350 = vmatpush1.msra.mxu0 %v107
    %351 = vmatprep.subr.mxu0 0.0
    %352 = vmatpush1.msra.mxu0 %v108
    %353 = vmatprep.subr.mxu0 0.0
    %354 = vmatpush1.msra.mxu0 %v109
    %355 = vmatprep.subr.mxu0 0.0
    %356 = vmatpush1.msra.mxu0 %v110
    %357 = vmatprep.subr.mxu0 0.0
    %358 = vmatpush1.msra.mxu0 %v111
    %359 = vmatprep.subr.mxu0 0.0
    %360 = vmatpush1.msra.mxu0 %v112
    %361 = vmatprep.subr.mxu0 0.0
    %362 = vmatpush1.msra.mxu0 %v113
    %363 = vmatprep.subr.mxu0 0.0
    %364 = vmatpush1.msra.mxu0 %v114
    %365 = vmatprep.subr.mxu0 0.0
    %366 = vmatpush1.msra.mxu0 0.0
    %367 = vmatprep.subr.mxu0 0.0
    %368 = vmatpush1.msra.mxu0 0.0
    %369 = vmatprep.subr.mxu0 0.0
    %370 = vmatpush1.msra.mxu0 0.0
    %371 = vmatprep.subr.mxu0 0.0
    %372 = vmatpush1.msra.mxu0 0.0
    %373 = vmatprep.subr.mxu0 0.0
    %374 = vmatpush1.msra.mxu0 0.0
    %375 = vmatprep.subr.mxu0 0.0
    %376 = vmatpush1.msra.mxu0 0.0
    %377 = vmatprep.subr.mxu0 0.0
    %378 = vmatpush1.msra.mxu0 0.0
    %379 = vmatprep.subr.mxu0 0.0
    %380 = vmatpush1.msra.mxu0 0.0
    %381 = vmatprep.subr.mxu0 0.0
    %382 = vmatpush1.msra.mxu0 0.0
    %383 = vmatprep.subr.mxu0 0.0
    %384 = vmatpush1.msra.mxu0 0.0
    %385 = vmatprep.subr.mxu0 0.0
    %386 = vmatpush1.msra.mxu0 0.0
    %387 = vmatprep.subr.mxu0 0.0
    %388 = vmatpush1.msra.mxu0 0.0
    %389 = vmatprep.subr.mxu0 0.0
    %390 = vmatpush1.msra.mxu0 0.0
    %391 = vmatprep.subr.mxu0 0.0
    %392 = vmatpush1.msra.mxu0 0.0
    %393 = vmatprep.subr.mxu0 0.0
    %394 = vmatpush1.msra.mxu0 0.0
    %395 = vmatprep.subr.mxu0 0.0
    %396 = vmatpush1.msra.mxu0 0.0
    %397 = vmatprep.mubr.f32.mxu0 0.0
    %398 = vmatmul.mubr.f32.gmra.mrb[0].mxu0 %v325
    %v399 = vpop.f32.mrb[0].mxu0
    %v400 = vadd.f32 0.0, %v399
    %v401 = vpop.f32.mrb[0].mxu0
    %402 = vdwg.mxu0
    %v403 = vadd.f32 %v332, %v400
    %v404 = vtanh.pop %v403
    %v405 = vsel %vm330, 1, 0
    %406 = vset.pattern.permute.xlu0 0
    %407 = vperm.xlu0 %406, %v405
    %v408 = vpop.permute.xlu0 %407
    %vm409 = vcmp.eq.s32.totalorder %v408, 1
    %v410 = vsel %vm409, %v404, 0.0
    %s411 = smul.u32 %s328, 8
    %s412 = scalar_lea.vmem [#allocation3], %s411
    %413 = vst [vmem:[%s412] sm:$0xff] %v410
    %v414 = vsel %vm409, %v404, %v325
    %s415 = sadd.s32 0, 2
    %v416 = vstv %s415
    %vm417 = vcmp.lt.s32.totalorder %v416, %v82
    %s418 = scalar_lea.vmem [#allocation2], 16
    %v419 = vld [vmem:[%s418] sm:$0xff]
    %420 = vmatprep.subr.mxu0 0.0
    %421 = vmatpush1.msra.mxu0 %v99
    %422 = vmatprep.subr.mxu0 0.0
    %423 = vmatpush1.msra.mxu0 %v100
    %424 = vmatprep.subr.mxu0 0.0
    %425 = vmatpush1.msra.mxu0 %v101
    %426 = vmatprep.subr.mxu0 0.0
    %427 = vmatpush1.msra.mxu0 %v102
    %428 = vmatprep.subr.mxu0 0.0
    %429 = vmatpush1.msra.mxu0 %v103
    %430 = vmatprep.subr.mxu0 0.0
    %431 = vmatpush1.msra.mxu0 %v104
    %432 = vmatprep.subr.mxu0 0.0
    %433 = vmatpush1.msra.mxu0 %v105
    %434 = vmatprep.subr.mxu0 0.0
    %435 = vmatpush1.msra.mxu0 %v106
    %436 = vmatprep.subr.mxu0 0.0
    %437 = vmatpush1.msra.mxu0 %v107
    %438 = vmatprep.subr.mxu0 0.0
    %439 = vmatpush1.msra.mxu0 %v108
    %440 = vmatprep.subr.mxu0 0.0
    %441 = vmatpush1.msra.mxu0 %v109
    %442 = vmatprep.subr.mxu0 0.0
    %443 = vmatpush1.msra.mxu0 %v110
    %444 = vmatprep.subr.mxu0 0.0
    %445 = vmatpush1.msra.mxu0 %v111
    %446 = vmatprep.subr.mxu0 0.0
    %447 = vmatpush1.msra.mxu0 %v112
    %448 = vmatprep.subr.mxu0 0.0
    %449 = vmatpush1.msra.mxu0 %v113
    %450 = vmatprep.subr.mxu0 0.0
    %451 = vmatpush1.msra.mxu0 %v114
    %452 = vmatprep.subr.mxu0 0.0
    %453 = vmatpush1.msra.mxu0 0.0
    %454 = vmatprep.subr.mxu0 0.0
    %455 = vmatpush1.msra.mxu0 0.0
    %456 = vmatprep.subr.mxu0 0.0
    %457 = vmatpush1.msra.mxu0 0.0
    %458 = vmatprep.subr.mxu0 0.0
    %459 = vmatpush1.msra.mxu0 0.0
    %460 = vmatprep.subr.mxu0 0.0
    %461 = vmatpush1.msra.mxu0 0.0
    %462 = vmatprep.subr.mxu0 0.0
    %463 = vmatpush1.msra.mxu0 0.0
    %464 = vmatprep.subr.mxu0 0.0
    %465 = vmatpush1.msra.mxu0 0.0
    %466 = vmatprep.subr.mxu0 0.0
    %467 = vmatpush1.msra.mxu0 0.0
    %468 = vmatprep.subr.mxu0 0.0
    %469 = vmatpush1.msra.mxu0 0.0
    %470 = vmatprep.subr.mxu0 0.0
    %471 = vmatpush1.msra.mxu0 0.0
    %472 = vmatprep.subr.mxu0 0.0
    %473 = vmatpush1.msra.mxu0 0.0
    %474 = vmatprep.subr.mxu0 0.0
    %475 = vmatpush1.msra.mxu0 0.0
    %476 = vmatprep.subr.mxu0 0.0
    %477 = vmatpush1.msra.mxu0 0.0
    %478 = vmatprep.subr.mxu0 0.0
    %479 = vmatpush1.msra.mxu0 0.0
    %480 = vmatprep.subr.mxu0 0.0
    %481 = vmatpush1.msra.mxu0 0.0
    %482 = vmatprep.subr.mxu0 0.0
    %483 = vmatpush1.msra.mxu0 0.0
    %484 = vmatprep.mubr.f32.mxu0 0.0
    %485 = vmatmul.mubr.f32.gmra.mrb[0].mxu0 %v414
    %v486 = vpop.f32.mrb[0].mxu0
    %v487 = vadd.f32 0.0, %v486
    %v488 = vpop.f32.mrb[0].mxu0
    %489 = vdwg.mxu0
    %v490 = vadd.f32 %v419, %v487
    %v491 = vtanh.pop %v490
    %v492 = vsel %vm417, 1, 0
    %493 = vset.pattern.permute.xlu0 0
    %494 = vperm.xlu0 %493, %v492
    %v495 = vpop.permute.xlu0 %494
    %vm496 = vcmp.eq.s32.totalorder %v495, 1
    %v497 = vsel %vm496, %v491, 0.0
    %s498 = smul.u32 %s415, 8
    %s499 = scalar_lea.vmem [#allocation3], %s498
    %500 = vst [vmem:[%s499] sm:$0xff] %v497
    %v501 = vsel %vm496, %v491, %v414
    %s502 = sadd.s32 0, 3
    %v503 = vstv %s502
    %vm504 = vcmp.lt.s32.totalorder %v503, %v82
    %s505 = scalar_lea.vmem [#allocation2], 24
    %v506 = vld [vmem:[%s505] sm:$0xff]
    %507 = vmatprep.subr.mxu0 0.0
    %508 = vmatpush1.msra.mxu0 %v99
    %509 = vmatprep.subr.mxu0 0.0
    %510 = vmatpush1.msra.mxu0 %v100
    %511 = vmatprep.subr.mxu0 0.0
    %512 = vmatpush1.msra.mxu0 %v101
    %513 = vmatprep.subr.mxu0 0.0
    %514 = vmatpush1.msra.mxu0 %v102
    %515 = vmatprep.subr.mxu0 0.0
    %516 = vmatpush1.msra.mxu0 %v103
    %517 = vmatprep.subr.mxu0 0.0
    %518 = vmatpush1.msra.mxu0 %v104
    %519 = vmatprep.subr.mxu0 0.0
    %520 = vmatpush1.msra.mxu0 %v105
    %521 = vmatprep.subr.mxu0 0.0
    %522 = vmatpush1.msra.mxu0 %v106
    %523 = vmatprep.subr.mxu0 0.0
    %524 = vmatpush1.msra.mxu0 %v107
    %525 = vmatprep.subr.mxu0 0.0
    %526 = vmatpush1.msra.mxu0 %v108
    %527 = vmatprep.subr.mxu0 0.0
    %528 = vmatpush1.msra.mxu0 %v109
    %529 = vmatprep.subr.mxu0 0.0
    %530 = vmatpush1.msra.mxu0 %v110
    %531 = vmatprep.subr.mxu0 0.0
    %532 = vmatpush1.msra.mxu0 %v111
    %533 = vmatprep.subr.mxu0 0.0
    %534 = vmatpush1.msra.mxu0 %v112
    %535 = vmatprep.subr.mxu0 0.0
    %536 = vmatpush1.msra.mxu0 %v113
    %537 = vmatprep.subr.mxu0 0.0
    %538 = vmatpush1.msra.mxu0 %v114
    %539 = vmatprep.subr.mxu0 0.0
    %540 = vmatpush1.msra.mxu0 0.0
    %541 = vmatprep.subr.mxu0 0.0
    %542 = vmatpush1.msra.mxu0 0.0
    %543 = vmatprep.subr.mxu0 0.0
    %544 = vmatpush1.msra.mxu0 0.0
    %545 = vmatprep.subr.mxu0 0.0
    %546 = vmatpush1.msra.mxu0 0.0
    %547 = vmatprep.subr.mxu0 0.0
    %548 = vmatpush1.msra.mxu0 0.0
    %549 = vmatprep.subr.mxu0 0.0
    %550 = vmatpush1.msra.mxu0 0.0
    %551 = vmatprep.subr.mxu0 0.0
    %552 = vmatpush1.msra.mxu0 0.0
    %553 = vmatprep.subr.mxu0 0.0
    %554 = vmatpush1.msra.mxu0 0.0
    %555 = vmatprep.subr.mxu0 0.0
    %556 = vmatpush1.msra.mxu0 0.0
    %557 = vmatprep.subr.mxu0 0.0
    %558 = vmatpush1.msra.mxu0 0.0
    %559 = vmatprep.subr.mxu0 0.0
    %560 = vmatpush1.msra.mxu0 0.0
    %561 = vmatprep.subr.mxu0 0.0
    %562 = vmatpush1.msra.mxu0 0.0
    %563 = vmatprep.subr.mxu0 0.0
    %564 = vmatpush1.msra.mxu0 0.0
    %565 = vmatprep.subr.mxu0 0.0
    %566 = vmatpush1.msra.mxu0 0.0
    %567 = vmatprep.subr.mxu0 0.0
    %568 = vmatpush1.msra.mxu0 0.0
    %569 = vmatprep.subr.mxu0 0.0
    %570 = vmatpush1.msra.mxu0 0.0
    %571 = vmatprep.mubr.f32.mxu0 0.0
    %572 = vmatmul.mubr.f32.gmra.mrb[0].mxu0 %v501
    %v573 = vpop.f32.mrb[0].mxu0
    %v574 = vadd.f32 0.0, %v573
    %v575 = vpop.f32.mrb[0].mxu0
    %576 = vdwg.mxu0
    %v577 = vadd.f32 %v506, %v574
    %v578 = vtanh.pop %v577
    %v579 = vsel %vm504, 1, 0
    %580 = vset.pattern.permute.xlu0 0
    %581 = vperm.xlu0 %580, %v579
    %v582 = vpop.permute.xlu0 %581
    %vm583 = vcmp.eq.s32.totalorder %v582, 1
    %v584 = vsel %vm583, %v578, 0.0
    %s585 = smul.u32 %s502, 8
    %s586 = scalar_lea.vmem [#allocation3], %s585
    %587 = vst [vmem:[%s586] sm:$0xff] %v584
    %v588 = vsel %vm583, %v578, %v501
    %s589 = sadd.s32 0, 4
    %v590 = vstv %s589
    %vm591 = vcmp.lt.s32.totalorder %v590, %v82
    %s592 = scalar_lea.vmem [#allocation2], 32
    %v593 = vld [vmem:[%s592] sm:$0xff]
    %594 = vmatprep.subr.mxu0 0.0
    %595 = vmatpush1.msra.mxu0 %v99
    %596 = vmatprep.subr.mxu0 0.0
    %597 = vmatpush1.msra.mxu0 %v100
    %598 = vmatprep.subr.mxu0 0.0
    %599 = vmatpush1.msra.mxu0 %v101
    %600 = vmatprep.subr.mxu0 0.0
    %601 = vmatpush1.msra.mxu0 %v102
    %602 = vmatprep.subr.mxu0 0.0
    %603 = vmatpush1.msra.mxu0 %v103
    %604 = vmatprep.subr.mxu0 0.0
    %605 = vmatpush1.msra.mxu0 %v104
    %606 = vmatprep.subr.mxu0 0.0
    %607 = vmatpush1.msra.mxu0 %v105
    %608 = vmatprep.subr.mxu0 0.0
    %609 = vmatpush1.msra.mxu0 %v106
    %610 = vmatprep.subr.mxu0 0.0
    %611 = vmatpush1.msra.mxu0 %v107
    %612 = vmatprep.subr.mxu0 0.0
    %613 = vmatpush1.msra.mxu0 %v108
    %614 = vmatprep.subr.mxu0 0.0
    %615 = vmatpush1.msra.mxu0 %v109
    %616 = vmatprep.subr.mxu0 0.0
    %617 = vmatpush1.msra.mxu0 %v110
    %618 = vmatprep.subr.mxu0 0.0
    %619 = vmatpush1.msra.mxu0 %v111
    %620 = vmatprep.subr.mxu0 0.0
    %621 = vmatpush1.msra.mxu0 %v112
    %622 = vmatprep.subr.mxu0 0.0
    %623 = vmatpush1.msra.mxu0 %v113
    %624 = vmatprep.subr.mxu0 0.0
    %625 = vmatpush1.msra.mxu0 %v114
    %626 = vmatprep.subr.mxu0 0.0
    %627 = vmatpush1.msra.mxu0 0.0
    %628 = vmatprep.subr.mxu0 0.0
    %629 = vmatpush1.msra.mxu0 0.0
    %630 = vmatprep.subr.mxu0 0.0
    %631 = vmatpush1.msra.mxu0 0.0
    %632 = vmatprep.subr.mxu0 0.0
    %633 = vmatpush1.msra.mxu0 0.0
    %634 = vmatprep.subr.mxu0 0.0
    %635 = vmatpush1.msra.mxu0 0.0
    %636 = vmatprep.subr.mxu0 0.0
    %637 = vmatpush1.msra.mxu0 0.0
    %638 = vmatprep.subr.mxu0 0.0
    %639 = vmatpush1.msra.mxu0 0.0
    %640 = vmatprep.subr.mxu0 0.0
    %641 = vmatpush1.msra.mxu0 0.0
    %642 = vmatprep.subr.mxu0 0.0
    %643 = vmatpush1.msra.mxu0 0.0
    %644 = vmatprep.subr.mxu0 0.0
    %645 = vmatpush1.msra.mxu0 0.0
    %646 = vmatprep.subr.mxu0 0.0
    %647 = vmatpush1.msra.mxu0 0.0
    %648 = vmatprep.subr.mxu0 0.0
    %649 = vmatpush1.msra.mxu0 0.0
    %650 = vmatprep.subr.mxu0 0.0
    %651 = vmatpush1.msra.mxu0 0.0
    %652 = vmatprep.subr.mxu0 0.0
    %653 = vmatpush1.msra.mxu0 0.0
    %654 = vmatprep.subr.mxu0 0.0
    %655 = vmatpush1.msra.mxu0 0.0
    %656 = vmatprep.subr.mxu0 0.0
    %657 = vmatpush1.msra.mxu0 0.0
    %658 = vmatprep.mubr.f32.mxu0 0.0
    %659 = vmatmul.mubr.f32.gmra.mrb[0].mxu0 %v588
    %v660 = vpop.f32.mrb[0].mxu0
    %v661 = vadd.f32 0.0, %v660
    %v662 = vpop.f32.mrb[0].mxu0
    %663 = vdwg.mxu0
    %v664 = vadd.f32 %v593, %v661
    %v665 = vtanh.pop %v664
    %v666 = vsel %vm591, 1, 0
    %667 = vset.pattern.permute.xlu0 0
    %668 = vperm.xlu0 %667, %v666
    %v669 = vpop.permute.xlu0 %668
    %vm670 = vcmp.eq.s32.totalorder %v669, 1
    %v671 = vsel %vm670, %v665, 0.0
    %s672 = smul.u32 %s589, 8
    %s673 = scalar_lea.vmem [#allocation3], %s672
    %674 = vst [vmem:[%s673] sm:$0xff] %v671
    %v675 = vsel %vm670, %v665, %v588
    %s676 = sadd.s32 0, 5
    %v677 = vstv %s676
    %vm678 = vcmp.lt.s32.totalorder %v677, %v82
    %s679 = scalar_lea.vmem [#allocation2], 40
    %v680 = vld [vmem:[%s679] sm:$0xff]
    %681 = vmatprep.subr.mxu0 0.0
    %682 = vmatpush1.msra.mxu0 %v99
    %683 = vmatprep.subr.mxu0 0.0
    %684 = vmatpush1.msra.mxu0 %v100
    %685 = vmatprep.subr.mxu0 0.0
    %686 = vmatpush1.msra.mxu0 %v101
    %687 = vmatprep.subr.mxu0 0.0
    %688 = vmatpush1.msra.mxu0 %v102
    %689 = vmatprep.subr.mxu0 0.0
    %690 = vmatpush1.msra.mxu0 %v103
    %691 = vmatprep.subr.mxu0 0.0
    %692 = vmatpush1.msra.mxu0 %v104
    %693 = vmatprep.subr.mxu0 0.0
    %694 = vmatpush1.msra.mxu0 %v105
    %695 = vmatprep.subr.mxu0 0.0
    %696 = vmatpush1.msra.mxu0 %v106
    %697 = vmatprep.subr.mxu0 0.0
    %698 = vmatpush1.msra.mxu0 %v107
    %699 = vmatprep.subr.mxu0 0.0
    %700 = vmatpush1.msra.mxu0 %v108
    %701 = vmatprep.subr.mxu0 0.0
    %702 = vmatpush1.msra.mxu0 %v109
    %703 = vmatprep.subr.mxu0 0.0
    %704 = vmatpush1.msra.mxu0 %v110
    %705 = vmatprep.subr.mxu0 0.0
    %706 = vmatpush1.msra.mxu0 %v111
    %707 = vmatprep.subr.mxu0 0.0
    %708 = vmatpush1.msra.mxu0 %v112
    %709 = vmatprep.subr.mxu0 0.0
    %710 = vmatpush1.msra.mxu0 %v113
    %711 = vmatprep.subr.mxu0 0.0
    %712 = vmatpush1.msra.mxu0 %v114
    %713 = vmatprep.subr.mxu0 0.0
    %714 = vmatpush1.msra.mxu0 0.0
    %715 = vmatprep.subr.mxu0 0.0
    %716 = vmatpush1.msra.mxu0 0.0
    %717 = vmatprep.subr.mxu0 0.0
    %718 = vmatpush1.msra.mxu0 0.0
    %719 = vmatprep.subr.mxu0 0.0
    %720 = vmatpush1.msra.mxu0 0.0
    %721 = vmatprep.subr.mxu0 0.0
    %722 = vmatpush1.msra.mxu0 0.0
    %723 = vmatprep.subr.mxu0 0.0
    %724 = vmatpush1.msra.mxu0 0.0
    %725 = vmatprep.subr.mxu0 0.0
    %726 = vmatpush1.msra.mxu0 0.0
    %727 = vmatprep.subr.mxu0 0.0
    %728 = vmatpush1.msra.mxu0 0.0
    %729 = vmatprep.subr.mxu0 0.0
    %730 = vmatpush1.msra.mxu0 0.0
    %731 = vmatprep.subr.mxu0 0.0
    %732 = vmatpush1.msra.mxu0 0.0
    %733 = vmatprep.subr.mxu0 0.0
    %734 = vmatpush1.msra.mxu0 0.0
    %735 = vmatprep.subr.mxu0 0.0
    %736 = vmatpush1.msra.mxu0 0.0
    %737 = vmatprep.subr.mxu0 0.0
    %738 = vmatpush1.msra.mxu0 0.0
    %739 = vmatprep.subr.mxu0 0.0
    %740 = vmatpush1.msra.mxu0 0.0
    %741 = vmatprep.subr.mxu0 0.0
    %742 = vmatpush1.msra.mxu0 0.0
    %743 = vmatprep.subr.mxu0 0.0
    %744 = vmatpush1.msra.mxu0 0.0
    %745 = vmatprep.mubr.f32.mxu0 0.0
    %746 = vmatmul.mubr.f32.gmra.mrb[0].mxu0 %v675
    %v747 = vpop.f32.mrb[0].mxu0
    %v748 = vadd.f32 0.0, %v747
    %v749 = vpop.f32.mrb[0].mxu0
    %750 = vdwg.mxu0
    %v751 = vadd.f32 %v680, %v748
    %v752 = vtanh.pop %v751
    %v753 = vsel %vm678, 1, 0
    %754 = vset.pattern.permute.xlu0 0
    %755 = vperm.xlu0 %754, %v753
    %v756 = vpop.permute.xlu0 %755
    %vm757 = vcmp.eq.s32.totalorder %v756, 1
    %v758 = vsel %vm757, %v752, 0.0
    %s759 = smul.u32 %s676, 8
    %s760 = scalar_lea.vmem [#allocation3], %s759
    %761 = vst [vmem:[%s760] sm:$0xff] %v758
    %v762 = vsel %vm757, %v752, %v675
    %s763 = sadd.s32 0, 6
    %v764 = vstv %s763
    %vm765 = vcmp.lt.s32.totalorder %v764, %v82
    %s766 = scalar_lea.vmem [#allocation2], 48
    %v767 = vld [vmem:[%s766] sm:$0xff]
    %768 = vmatprep.subr.mxu0 0.0
    %769 = vmatpush1.msra.mxu0 %v99
    %770 = vmatprep.subr.mxu0 0.0
    %771 = vmatpush1.msra.mxu0 %v100
    %772 = vmatprep.subr.mxu0 0.0
    %773 = vmatpush1.msra.mxu0 %v101
    %774 = vmatprep.subr.mxu0 0.0
    %775 = vmatpush1.msra.mxu0 %v102
    %776 = vmatprep.subr.mxu0 0.0
    %777 = vmatpush1.msra.mxu0 %v103
    %778 = vmatprep.subr.mxu0 0.0
    %779 = vmatpush1.msra.mxu0 %v104
    %780 = vmatprep.subr.mxu0 0.0
    %781 = vmatpush1.msra.mxu0 %v105
    %782 = vmatprep.subr.mxu0 0.0
    %783 = vmatpush1.msra.mxu0 %v106
    %784 = vmatprep.subr.mxu0 0.0
    %785 = vmatpush1.msra.mxu0 %v107
    %786 = vmatprep.subr.mxu0 0.0
    %787 = vmatpush1.msra.mxu0 %v108
    %788 = vmatprep.subr.mxu0 0.0
    %789 = vmatpush1.msra.mxu0 %v109
    %790 = vmatprep.subr.mxu0 0.0
    %791 = vmatpush1.msra.mxu0 %v110
    %792 = vmatprep.subr.mxu0 0.0
    %793 = vmatpush1.msra.mxu0 %v111
    %794 = vmatprep.subr.mxu0 0.0
    %795 = vmatpush1.msra.mxu0 %v112
    %796 = vmatprep.subr.mxu0 0.0
    %797 = vmatpush1.msra.mxu0 %v113
    %798 = vmatprep.subr.mxu0 0.0
    %799 = vmatpush1.msra.mxu0 %v114
    %800 = vmatprep.subr.mxu0 0.0
    %801 = vmatpush1.msra.mxu0 0.0
    %802 = vmatprep.subr.mxu0 0.0
    %803 = vmatpush1.msra.mxu0 0.0
    %804 = vmatprep.subr.mxu0 0.0
    %805 = vmatpush1.msra.mxu0 0.0
    %806 = vmatprep.subr.mxu0 0.0
    %807 = vmatpush1.msra.mxu0 0.0
    %808 = vmatprep.subr.mxu0 0.0
    %809 = vmatpush1.msra.mxu0 0.0
    %810 = vmatprep.subr.mxu0 0.0
    %811 = vmatpush1.msra.mxu0 0.0
    %812 = vmatprep.subr.mxu0 0.0
    %813 = vmatpush1.msra.mxu0 0.0
    %814 = vmatprep.subr.mxu0 0.0
    %815 = vmatpush1.msra.mxu0 0.0
    %816 = vmatprep.subr.mxu0 0.0
    %817 = vmatpush1.msra.mxu0 0.0
    %818 = vmatprep.subr.mxu0 0.0
    %819 = vmatpush1.msra.mxu0 0.0
    %820 = vmatprep.subr.mxu0 0.0
    %821 = vmatpush1.msra.mxu0 0.0
    %822 = vmatprep.subr.mxu0 0.0
    %823 = vmatpush1.msra.mxu0 0.0
    %824 = vmatprep.subr.mxu0 0.0
    %825 = vmatpush1.msra.mxu0 0.0
    %826 = vmatprep.subr.mxu0 0.0
    %827 = vmatpush1.msra.mxu0 0.0
    %828 = vmatprep.subr.mxu0 0.0
    %829 = vmatpush1.msra.mxu0 0.0
    %830 = vmatprep.subr.mxu0 0.0
    %831 = vmatpush1.msra.mxu0 0.0
    %832 = vmatprep.mubr.f32.mxu0 0.0
    %833 = vmatmul.mubr.f32.gmra.mrb[0].mxu0 %v762
    %v834 = vpop.f32.mrb[0].mxu0
    %v835 = vadd.f32 0.0, %v834
    %v836 = vpop.f32.mrb[0].mxu0
    %837 = vdwg.mxu0
    %v838 = vadd.f32 %v767, %v835
    %v839 = vtanh.pop %v838
    %v840 = vsel %vm765, 1, 0
    %841 = vset.pattern.permute.xlu0 0
    %842 = vperm.xlu0 %841, %v840
    %v843 = vpop.permute.xlu0 %842
    %vm844 = vcmp.eq.s32.totalorder %v843, 1
    %v845 = vsel %vm844, %v839, 0.0
    %s846 = smul.u32 %s763, 8
    %s847 = scalar_lea.vmem [#allocation3], %s846
    %848 = vst [vmem:[%s847] sm:$0xff] %v845
    %v849 = vsel %vm844, %v839, %v762
    %s850 = sadd.s32 0, 7
    %v851 = vstv %s850
    %vm852 = vcmp.lt.s32.totalorder %v851, %v82
    %s853 = scalar_lea.vmem [#allocation2], 56
    %v854 = vld [vmem:[%s853] sm:$0xff]
    %855 = vmatprep.subr.mxu0 0.0
    %856 = vmatpush1.msra.mxu0 %v99
    %857 = vmatprep.subr.mxu0 0.0
    %858 = vmatpush1.msra.mxu0 %v100
    %859 = vmatprep.subr.mxu0 0.0
    %860 = vmatpush1.msra.mxu0 %v101
    %861 = vmatprep.subr.mxu0 0.0
    %862 = vmatpush1.msra.mxu0 %v102
    %863 = vmatprep.subr.mxu0 0.0
    %864 = vmatpush1.msra.mxu0 %v103
    %865 = vmatprep.subr.mxu0 0.0
    %866 = vmatpush1.msra.mxu0 %v104
    %867 = vmatprep.subr.mxu0 0.0
    %868 = vmatpush1.msra.mxu0 %v105
    %869 = vmatprep.subr.mxu0 0.0
    %870 = vmatpush1.msra.mxu0 %v106
    %871 = vmatprep.subr.mxu0 0.0
    %872 = vmatpush1.msra.mxu0 %v107
    %873 = vmatprep.subr.mxu0 0.0
    %874 = vmatpush1.msra.mxu0 %v108
    %875 = vmatprep.subr.mxu0 0.0
    %876 = vmatpush1.msra.mxu0 %v109
    %877 = vmatprep.subr.mxu0 0.0
    %878 = vmatpush1.msra.mxu0 %v110
    %879 = vmatprep.subr.mxu0 0.0
    %880 = vmatpush1.msra.mxu0 %v111
    %881 = vmatprep.subr.mxu0 0.0
    %882 = vmatpush1.msra.mxu0 %v112
    %883 = vmatprep.subr.mxu0 0.0
    %884 = vmatpush1.msra.mxu0 %v113
    %885 = vmatprep.subr.mxu0 0.0
    %886 = vmatpush1.msra.mxu0 %v114
    %887 = vmatprep.subr.mxu0 0.0
    %888 = vmatpush1.msra.mxu0 0.0
    %889 = vmatprep.subr.mxu0 0.0
    %890 = vmatpush1.msra.mxu0 0.0
    %891 = vmatprep.subr.mxu0 0.0
    %892 = vmatpush1.msra.mxu0 0.0
    %893 = vmatprep.subr.mxu0 0.0
    %894 = vmatpush1.msra.mxu0 0.0
    %895 = vmatprep.subr.mxu0 0.0
    %896 = vmatpush1.msra.mxu0 0.0
    %897 = vmatprep.subr.mxu0 0.0
    %898 = vmatpush1.msra.mxu0 0.0
    %899 = vmatprep.subr.mxu0 0.0
    %900 = vmatpush1.msra.mxu0 0.0
    %901 = vmatprep.subr.mxu0 0.0
    %902 = vmatpush1.msra.mxu0 0.0
    %903 = vmatprep.subr.mxu0 0.0
    %904 = vmatpush1.msra.mxu0 0.0
    %905 = vmatprep.subr.mxu0 0.0
    %906 = vmatpush1.msra.mxu0 0.0
    %907 = vmatprep.subr.mxu0 0.0
    %908 = vmatpush1.msra.mxu0 0.0
    %909 = vmatprep.subr.mxu0 0.0
    %910 = vmatpush1.msra.mxu0 0.0
    %911 = vmatprep.subr.mxu0 0.0
    %912 = vmatpush1.msra.mxu0 0.0
    %913 = vmatprep.subr.mxu0 0.0
    %914 = vmatpush1.msra.mxu0 0.0
    %915 = vmatprep.subr.mxu0 0.0
    %916 = vmatpush1.msra.mxu0 0.0
    %917 = vmatprep.subr.mxu0 0.0
    %918 = vmatpush1.msra.mxu0 0.0
    %919 = vmatprep.mubr.f32.mxu0 0.0
    %920 = vmatmul.mubr.f32.gmra.mrb[0].mxu0 %v849
    %v921 = vpop.f32.mrb[0].mxu0
    %v922 = vadd.f32 0.0, %v921
    %v923 = vpop.f32.mrb[0].mxu0
    %924 = vdwg.mxu0
    %v925 = vadd.f32 %v854, %v922
    %v926 = vtanh.pop %v925
    %v927 = vsel %vm852, 1, 0
    %928 = vset.pattern.permute.xlu0 0
    %929 = vperm.xlu0 %928, %v927
    %v930 = vpop.permute.xlu0 %929
    %vm931 = vcmp.eq.s32.totalorder %v930, 1
    %v932 = vsel %vm931, %v926, 0.0
    %s933 = smul.u32 %s850, 8
    %s934 = scalar_lea.vmem [#allocation3], %s933
    %935 = vst [vmem:[%s934] sm:$0xff] %v932
    %v936 = vsel %vm931, %v926, %v849
    %937 = vst [vmem:[#allocation5] sm:$0xff] %v936
    %v938 = vld [vmem:[%s326] sm:$0xff]
    %v939 = vld [vmem:[%s326 + $0x8] sm:$0xff]
    %v940 = vld [vmem:[%s326 + $0x10] sm:$0xff]
    %v941 = vld [vmem:[%s326 + $0x18] sm:$0xff]
    %v942 = vld [vmem:[%s326 + $0x20] sm:$0xff]
    %v943 = vld [vmem:[%s326 + $0x28] sm:$0xff]
    %v944 = vld [vmem:[%s326 + $0x30] sm:$0xff]
    %v945 = vld [vmem:[%s326 + $0x38] sm:$0xff]
    %v946 = vld [vmem:[#allocation5] sm:$0xff]
    %v947 = vmul.f32 %v938, %v946
    %v948 = vmul.f32 %v939, %v946
    %v949 = vmul.f32 %v940, %v946
    %v950 = vmul.f32 %v941, %v946
    %v951 = vmul.f32 %v942, %v946
    %v952 = vmul.f32 %v943, %v946
    %v953 = vmul.f32 %v944, %v946
    %v954 = vmul.f32 %v945, %v946
    %955 = vadd.xlane.f32.xlu0 %v947
    %v956 = vpop.xlane.xlu0 %955
    %957 = vadd.xlane.f32.xlu0 %v948
    %v958 = vpop.xlane.xlu0 %957
    %959 = vadd.xlane.f32.xlu0 %v949
    %v960 = vpop.xlane.xlu0 %959
    %961 = vadd.xlane.f32.xlu0 %v950
    %v962 = vpop.xlane.xlu0 %961
    %963 = vadd.xlane.f32.xlu0 %v951
    %v964 = vpop.xlane.xlu0 %963
    %965 = vadd.xlane.f32.xlu0 %v952
    %v966 = vpop.xlane.xlu0 %965
    %967 = vadd.xlane.f32.xlu0 %v953
    %v968 = vpop.xlane.xlu0 %967
    %969 = vadd.xlane.f32.xlu0 %v954
    %v970 = vpop.xlane.xlu0 %969
    %v979 = vlaneseq
    %v980 = vand.u32 %v979, 127
    %v981 = vlaneseq
    %v982 = vshrl.u32 %v981, 7
    %v983 = vsub.s32 %v980, %v982
    %v984 = vrot.slane %v956, %v983
    %v985 = vlaneseq
    %v986 = vshrl.u32 %v985, 7
    %v987 = vsub.s32 %v980, %v986
    %v988 = vrot.slane %v958, %v987
    %v989 = vlaneseq
    %v990 = vshrl.u32 %v989, 7
    %v991 = vsub.s32 %v980, %v990
    %v992 = vrot.slane %v960, %v991
    %v993 = vlaneseq
    %v994 = vshrl.u32 %v993, 7
    %v995 = vsub.s32 %v980, %v994
    %v996 = vrot.slane %v962, %v995
    %v997 = vlaneseq
    %v998 = vshrl.u32 %v997, 7
    %v999 = vsub.s32 %v980, %v998
    %v1000 = vrot.slane %v964, %v999
    %v1001 = vlaneseq
    %v1002 = vshrl.u32 %v1001, 7
    %v1003 = vsub.s32 %v980, %v1002
    %v1004 = vrot.slane %v966, %v1003
    %v1005 = vlaneseq
    %v1006 = vshrl.u32 %v1005, 7
    %v1007 = vsub.s32 %v980, %v1006
    %v1008 = vrot.slane %v968, %v1007
    %v1009 = vlaneseq
    %v1010 = vshrl.u32 %v1009, 7
    %v1011 = vsub.s32 %v980, %v1010
    %v1012 = vrot.slane %v970, %v1011
    %vm1013 = vcmask 1041409
    %v1014 = vsel %vm1013, %v988, %v984
    %vm1015 = vcmask 1042434
    %v1016 = vsel %vm1015, %v992, %v1014
    %vm1017 = vcmask 1043459
    %v1018 = vsel %vm1017, %v996, %v1016
    %vm1019 = vcmask 1044484
    %v1020 = vsel %vm1019, %v1000, %v1018
    %vm1021 = vcmask 1045509
    %v1022 = vsel %vm1021, %v1004, %v1020
    %vm1023 = vcmask 1046534
    %v1024 = vsel %vm1023, %v1008, %v1022
    %vm1025 = vcmask 1047559
    %v1026 = vsel %vm1025, %v1012, %v1024
    %vm1028 = vcmask 64512
    %1029 = vst.msk [vmem:[#allocation4] sm:$0xff] %vm1028, %v1026
    %v1030 = vld [vmem:[#allocation4] sm:$0xff]
    %v1031 = vsel %vm1028, %v1030, -inf
    %v1032 = vrot.slane %v1031, 4
    %v1033 = vmax.f32 %v1031, %v1032
    %v1034 = vrot.slane %v1033, 2
    %v1035 = vmax.f32 %v1033, %v1034
    %v1036 = vrot.slane %v1035, 1
    %v1037 = vmax.f32 %v1035, %v1036
    %v1038 = vsub.f32 %v1030, %v1037
    %v1039 = vmul.f32 %v1038, 1.442695
    %v1040 = vpow.pop %v1039
    %v1041 = vsel %vm1028, %v1040, 0.0
    %v1042 = vrot.slane %v1041, 4
    %v1043 = vadd.f32 %v1041, %v1042
    %v1044 = vrot.slane %v1043, 2
    %v1045 = vadd.f32 %v1043, %v1044
    %v1046 = vrot.slane %v1045, 1
    %v1047 = vadd.f32 %v1045, %v1046
    %v1048 = vrcp.pop %v1047
    %v1049 = vmul.f32 %v1040, %v1048
    %1050 = vst.msk [vmem:[#allocation4] sm:$0xff] %vm1028, %v1049
    %1051 = vst [vmem:[#allocation6] sm:$0xff] 0.0
    %v1052 = vld [vmem:[%s326] sm:$0xff]
    %v1053 = vld [vmem:[%s326 + $0x8] sm:$0xff]
    %v1054 = vld [vmem:[%s326 + $0x10] sm:$0xff]
    %v1055 = vld [vmem:[%s326 + $0x18] sm:$0xff]
    %v1056 = vld [vmem:[%s326 + $0x20] sm:$0xff]
    %v1057 = vld [vmem:[%s326 + $0x28] sm:$0xff]
    %v1058 = vld [vmem:[%s326 + $0x30] sm:$0xff]
    %v1059 = vld [vmem:[%s326 + $0x38] sm:$0xff]
    %v1060 = vld [vmem:[#allocation4] sm:$0xff]
    %v1061 = vld [vmem:[#allocation6] sm:$0xff]
    %v1062 = vlaneseq
    %v1063 = vshrl.u32 %v1062, 7
    %v1064 = vsub.s32 0, %v1063
    %v1065 = vrot.slane %v1060, %v1064
    %1067 = vbcast.lane.b32.xlu0 %v1065, 256
    %v1068 = vpop.permute.xlu0 %1067
    %v1069 = vlaneseq
    %v1070 = vshrl.u32 %v1069, 7
    %v1071 = vsub.s32 1, %v1070
    %v1072 = vrot.slane %v1060, %v1071
    %1074 = vbcast.lane.b32.xlu0 %v1072, 256
    %v1075 = vpop.permute.xlu0 %1074
    %v1076 = vlaneseq
    %v1077 = vshrl.u32 %v1076, 7
    %v1078 = vsub.s32 2, %v1077
    %v1079 = vrot.slane %v1060, %v1078
    %1081 = vbcast.lane.b32.xlu0 %v1079, 256
    %v1082 = vpop.permute.xlu0 %1081
    %v1083 = vlaneseq
    %v1084 = vshrl.u32 %v1083, 7
    %v1085 = vsub.s32 3, %v1084
    %v1086 = vrot.slane %v1060, %v1085
    %1088 = vbcast.lane.b32.xlu0 %v1086, 256
    %v1089 = vpop.permute.xlu0 %1088
    %v1090 = vlaneseq
    %v1091 = vshrl.u32 %v1090, 7
    %v1092 = vsub.s32 4, %v1091
    %v1093 = vrot.slane %v1060, %v1092
    %1095 = vbcast.lane.b32.xlu0 %v1093, 256
    %v1096 = vpop.permute.xlu0 %1095
    %v1097 = vlaneseq
    %v1098 = vshrl.u32 %v1097, 7
    %v1099 = vsub.s32 5, %v1098
    %v1100 = vrot.slane %v1060, %v1099
    %1102 = vbcast.lane.b32.xlu0 %v1100, 256
    %v1103 = vpop.permute.xlu0 %1102
    %v1104 = vlaneseq
    %v1105 = vshrl.u32 %v1104, 7
    %v1106 = vsub.s32 6, %v1105
    %v1107 = vrot.slane %v1060, %v1106
    %1109 = vbcast.lane.b32.xlu0 %v1107, 256
    %v1110 = vpop.permute.xlu0 %1109
    %v1111 = vlaneseq
    %v1112 = vshrl.u32 %v1111, 7
    %v1113 = vsub.s32 7, %v1112
    %v1114 = vrot.slane %v1060, %v1113
    %1116 = vbcast.lane.b32.xlu0 %v1114, 256
    %v1117 = vpop.permute.xlu0 %1116
    %v1118 = vmul.f32 %v1052, %v1068
    %v1119 = vmul.f32 %v1053, %v1075
    %v1120 = vmul.f32 %v1054, %v1082
    %v1121 = vmul.f32 %v1055, %v1089
    %v1122 = vmul.f32 %v1056, %v1096
    %v1123 = vmul.f32 %v1057, %v1103
    %v1124 = vmul.f32 %v1058, %v1110
    %v1125 = vmul.f32 %v1059, %v1117
    %v1126 = vadd.f32 %v1118, %v1119
    %v1127 = vadd.f32 %v1126, %v1120
    %v1128 = vadd.f32 %v1127, %v1121
    %v1129 = vadd.f32 %v1128, %v1122
    %v1130 = vadd.f32 %v1129, %v1123
    %v1131 = vadd.f32 %v1130, %v1124
    %v1132 = vadd.f32 %v1131, %v1125
    %v1133 = vadd.f32 %v1061, %v1132
    %1134 = vst [vmem:[#allocation6] sm:$0xff] %v1133
    %v1135 = vld [vmem:[#allocation6] sm:$0xff]
    %v1136 = vld [vmem:[#allocation13] sm:$0xff]
    %v1137 = vld [vmem:[#allocation13 + $0x8] sm:$0xff]
    %v1138 = vld [vmem:[#allocation13 + $0x10] sm:$0xff]
    %v1139 = vld [vmem:[#allocation13 + $0x18] sm:$0xff]
    %v1140 = vld [vmem:[#allocation13 + $0x20] sm:$0xff]
    %v1141 = vld [vmem:[#allocation13 + $0x28] sm:$0xff]
    %v1142 = vld [vmem:[#allocation13 + $0x30] sm:$0xff]
    %v1143 = vld [vmem:[#allocation13 + $0x38] sm:$0xff]
    %v1144 = vld [vmem:[#allocation13 + $0x40] sm:$0xff]
    %v1145 = vld [vmem:[#allocation13 + $0x48] sm:$0xff]
    %v1146 = vld [vmem:[#allocation13 + $0x50] sm:$0xff]
    %v1147 = vld [vmem:[#allocation13 + $0x58] sm:$0xff]
    %v1148 = vld [vmem:[#allocation13 + $0x60] sm:$0xff]
    %v1149 = vld [vmem:[#allocation13 + $0x68] sm:$0xff]
    %v1150 = vld [vmem:[#allocation13 + $0x70] sm:$0xff]
    %v1151 = vld [vmem:[#allocation13 + $0x78] sm:$0xff]
    %v1152 = vld [vmem:[%s6] sm:$0x1]
    %v1154 = vlaneseq
    %v1155 = vshrl.u32 %v1154, 7
    %v1156 = vsub.s32 0, %v1155
    %v1157 = vrot.slane %v1152, %v1156
    %1159 = vmatprep.subr.mxu0 0.0
    %1160 = vmatpush1.msra.mxu0 %v1136
    %1161 = vmatprep.subr.mxu0 0.0
    %1162 = vmatpush1.msra.mxu0 %v1137
    %1163 = vmatprep.subr.mxu0 0.0
    %1164 = vmatpush1.msra.mxu0 %v1138
    %1165 = vmatprep.subr.mxu0 0.0
    %1166 = vmatpush1.msra.mxu0 %v1139
    %1167 = vmatprep.subr.mxu0 0.0
    %1168 = vmatpush1.msra.mxu0 %v1140
    %1169 = vmatprep.subr.mxu0 0.0
    %1170 = vmatpush1.msra.mxu0 %v1141
    %1171 = vmatprep.subr.mxu0 0.0
    %1172 = vmatpush1.msra.mxu0 %v1142
    %1173 = vmatprep.subr.mxu0 0.0
    %1174 = vmatpush1.msra.mxu0 %v1143
    %1175 = vmatprep.subr.mxu0 0.0
    %1176 = vmatpush1.msra.mxu0 %v1144
    %1177 = vmatprep.subr.mxu0 0.0
    %1178 = vmatpush1.msra.mxu0 %v1145
    %1179 = vmatprep.subr.mxu0 0.0
    %1180 = vmatpush1.msra.mxu0 %v1146
    %1181 = vmatprep.subr.mxu0 0.0
    %1182 = vmatpush1.msra.mxu0 %v1147
    %1183 = vmatprep.subr.mxu0 0.0
    %1184 = vmatpush1.msra.mxu0 %v1148
    %1185 = vmatprep.subr.mxu0 0.0
    %1186 = vmatpush1.msra.mxu0 %v1149
    %1187 = vmatprep.subr.mxu0 0.0
    %1188 = vmatpush1.msra.mxu0 %v1150
    %1189 = vmatprep.subr.mxu0 0.0
    %1190 = vmatpush1.msra.mxu0 %v1151
    %1191 = vmatprep.subr.mxu0 0.0
    %1192 = vmatpush1.msra.mxu0 0.0
    %1193 = vmatprep.subr.mxu0 0.0
    %1194 = vmatpush1.msra.mxu0 0.0
    %1195 = vmatprep.subr.mxu0 0.0
    %1196 = vmatpush1.msra.mxu0 0.0
    %1197 = vmatprep.subr.mxu0 0.0
    %1198 = vmatpush1.msra.mxu0 0.0
    %1199 = vmatprep.subr.mxu0 0.0
    %1200 = vmatpush1.msra.mxu0 0.0
    %1201 = vmatprep.subr.mxu0 0.0
    %1202 = vmatpush1.msra.mxu0 0.0
    %1203 = vmatprep.subr.mxu0 0.0
    %1204 = vmatpush1.msra.mxu0 0.0
    %1205 = vmatprep.subr.mxu0 0.0
    %1206 = vmatpush1.msra.mxu0 0.0
    %1207 = vmatprep.subr.mxu0 0.0
    %1208 = vmatpush1.msra.mxu0 0.0
    %1209 = vmatprep.subr.mxu0 0.0
    %1210 = vmatpush1.msra.mxu0 0.0
    %1211 = vmatprep.subr.mxu0 0.0
    %1212 = vmatpush1.msra.mxu0 0.0
    %1213 = vmatprep.subr.mxu0 0.0
    %1214 = vmatpush1.msra.mxu0 0.0
    %1215 = vmatprep.subr.mxu0 0.0
    %1216 = vmatpush1.msra.mxu0 0.0
    %1217 = vmatprep.subr.mxu0 0.0
    %1218 = vmatpush1.msra.mxu0 0.0
    %1219 = vmatprep.subr.mxu0 0.0
    %1220 = vmatpush1.msra.mxu0 0.0
    %1221 = vmatprep.subr.mxu0 0.0
    %1222 = vmatpush1.msra.mxu0 0.0
    %1223 = vmatprep.mubr.f32.mxu0 0.0
    %1224 = vmatmul.mubr.f32.gmra.mrb[0].mxu0 %v1135
    %v1225 = vpop.f32.mrb[0].mxu0
    %v1226 = vadd.f32 %v1157, %v1225
    %v1227 = vpop.f32.mrb[0].mxu0
    %1228 = vdwg.mxu0
    %vm1229 = vcmp.lt.s32.totalorder %v980, 4
    %v1230 = vsel %vm1229, %v1226, -1e+30
    %1231 = vmax.xlane.f32.xlu0 %v1230
    %v1232 = vpop.xlane.xlu0 %1231
    %v1233 = vsub.f32 %v1230, %v1232
    %v1234 = vmul.f32 %v1233, 1.442695
    %v1235 = vpow.pop %v1234
    %1236 = vadd.xlane.f32.xlu0 %v1235
    %v1237 = vpop.xlane.xlu0 %1236
    %v1238 = vlog2.pop %v1237
    %v1239 = vmul.f32 %v1238, 0.6931472
    %v1240 = vsub.f32 %v1233, %v1239
    %1241 = vst [vmem:[#allocation15] sm:$0xff] %v1240
    // Predicated region
    $region46: #{tpu_custom_call.1} parent=1 // pred_check
      _
    $region47: #{tpu_custom_call.1} parent=1 // pred_check_branch
      %1243 = sbr.rel (0) target = $region49
    $region48: #{tpu_custom_call.1} parent=1 // pred_region
      %s1245 = ssub.s32 128, 128
      %1246 = vsyncadd [#allocation9], %s1245
      %s1248 = sshll.u32 [#allocation15], 4
      %s1249 = int_to_ptr.vmem [resolvable:$true] %s1248
      %1251 = dma.vmem_to_hbm [thread:$0]  %s1249, 128, %s7, [#allocation9]
    $region49: #{tpu_custom_call.1} parent=1 // pred_fallthru
      _
    // Predicated region
    $region50: #{tpu_custom_call.1} parent=1 // pred_check
      _
    $region51: #{tpu_custom_call.1} parent=1 // pred_check_branch
      %1253 = sbr.rel (0) target = $region53
    $region52: #{tpu_custom_call.1} parent=1 // pred_region
      %1254 = dma.done [#allocation9], 128
    $region53: #{tpu_custom_call.1} parent=1 // pred_fallthru
      _
    %1255 = vsyncpa [#allocation8], 1
    %1256 = vsyncpa [#allocation11], 1
    %1257 = vsyncpa [#allocation14], 1
    %1258 = vsyncpa [#allocation9], 1

</llo_original>
